<compile_context>
chip_gen: v5e
topology: v5e:2x2
jax: 0.10.0
libtpu: 0.0.40
codegen_flags: <defaults>
</compile_context>

<pallas_src>
import math

import jax
import jax.numpy as jnp
from jax.experimental import pallas as pl
from jax.experimental.pallas import tpu as pltpu

_BN_EPS = 1e-5


def _round_up(n, m):
    return ((n + m - 1) // m) * m


def _bn_relu(h, bn):
    """Training-mode BatchNorm1d (batch stats, biased var) + ReLU, all f32.

    bn: (2, N) f32 packed block -- row 0 = gamma, row 1 = beta.
    Single-pass stats with a non-negativity clamp on the variance.
    """
    gamma = bn[0:1, :]
    beta = bn[1:2, :]
    mean = jnp.mean(h, axis=0, keepdims=True)
    mean_sq = jnp.mean(h * h, axis=0, keepdims=True)
    var = jnp.maximum(mean_sq - mean * mean, 0.0)
    inv = jax.lax.rsqrt(var + _BN_EPS) * gamma
    return jnp.maximum((h - mean) * inv + beta, 0.0)


def se_kernel(x_ref, w1_ref, bn1_ref, w2_ref, bn2_ref, w3_ref, b3_ref, o_ref):
    bf16 = jnp.bfloat16
    # x arrives f32 (single HBM read); cast to bf16 in-kernel for the MXU.
    x = x_ref[...].astype(bf16)

    # Layer 1: Linear (bias cancelled exactly by BN mean subtraction) -> BN -> ReLU
    h = jnp.dot(x, w1_ref[...], preferred_element_type=jnp.float32)
    h = _bn_relu(h, bn1_ref[...])

    # Layer 2: Linear (bias cancelled) -> BN -> ReLU
    h = jnp.dot(h.astype(bf16), w2_ref[...], preferred_element_type=jnp.float32)
    h = _bn_relu(h, bn2_ref[...])

    # Layer 3: Linear -> Sigmoid (trailing BN/ReLU dropped by olayers[:-2]).
    # w3/b3 are zero-padded to a lane-dense 128-multiple width; padded columns
    # are sliced off outside the kernel.
    z = (jnp.dot(h.astype(bf16), w3_ref[...], preferred_element_type=jnp.float32)
         + b3_ref[...])
    o_ref[...] = jax.nn.sigmoid(z).astype(o_ref.dtype)


def _vmem_limit_bytes(args, out_shape):
    """Resident footprint x2 (buffering) + headroom, capped at 32 MiB
    (well inside v7x's 64 MiB physical VMEM)."""
    total = sum(a.size * a.dtype.itemsize for a in args)
    total += math.prod(out_shape) * 4
    return int(min(max(2 * total + (4 << 20), 16 << 20), 32 << 20))


def prepare_params(params):
    """One-time prep (call OUTSIDE jit): bf16 master matmul weights, packed
    (2, N) BN blocks, lane-dense zero-padded last layer. b1/b2 are dropped
    (cancelled by training-mode BN)."""
    bf16 = jnp.bfloat16
    latent = params["w3"].shape[1]
    n_pad = _round_up(latent, 128)
    w3p = jnp.zeros((params["w3"].shape[0], n_pad), jnp.float32)
    w3p = w3p.at[:, :latent].set(params["w3"])
    b3p = jnp.zeros((1, n_pad), jnp.float32).at[:, :latent].set(params["b3"])
    return {
        "w1": params["w1"].astype(bf16),
        "bn1": jnp.concatenate([params["g1"], params["be1"]], axis=0),  # (2, h1)
        "w2": params["w2"].astype(bf16),
        "bn2": jnp.concatenate([params["g2"], params["be2"]], axis=0),  # (2, h2)
        "w3": w3p.astype(bf16),   # (h2, n_pad)
        "b3": b3p,                # (1, n_pad) f32
    }


def se_forward_padded(x, prep):
    """x: (B, D_in) f32. Returns the lane-dense (B, n_pad) sigmoid slab;
    slice [:, :latent] outside the kernel."""
    B = x.shape[0]
    n_pad = prep["w3"].shape[1]
    args = (x, prep["w1"], prep["bn1"], prep["w2"], prep["bn2"],
            prep["w3"], prep["b3"])

    def full_spec(a):
        # whole array resident in VMEM, single grid step
        return pl.BlockSpec(a.shape, lambda: tuple(0 for _ in a.shape))

    return pl.pallas_call(
        se_kernel,
        out_shape=jax.ShapeDtypeStruct((B, n_pad), jnp.float32),
        grid=(),
        in_specs=[full_spec(a) for a in args],
        out_specs=pl.BlockSpec((B, n_pad), lambda: (0, 0)),
        compiler_params=pltpu.CompilerParams(
            vmem_limit_bytes=_vmem_limit_bytes(args, (B, n_pad))),
    )(*args)


def init_params(key, input_dim, latent_dim, layers):
    """Deterministic synthetic init matching sE's parameter shapes (f32 master)."""
    sizes = [input_dim] + list(layers) + [latent_dim]
    ks = jax.random.split(key, 16)
    p = {}
    p["w1"] = (jax.random.normal(ks[0], (sizes[0], sizes[1]), jnp.float32)
               * (1.0 / math.sqrt(sizes[0])))
    p["b1"] = jax.random.normal(ks[1], (1, sizes[1]), jnp.float32) * 0.1
    p["g1"] = 1.0 + 0.1 * jax.random.normal(ks[2], (1, sizes[1]), jnp.float32)
    p["be1"] = 0.1 * jax.random.normal(ks[3], (1, sizes[1]), jnp.float32)
    p["w2"] = (jax.random.normal(ks[4], (sizes[1], sizes[2]), jnp.float32)
               * (1.0 / math.sqrt(sizes[1])))
    p["b2"] = jax.random.normal(ks[5], (1, sizes[2]), jnp.float32) * 0.1
    p["g2"] = 1.0 + 0.1 * jax.random.normal(ks[6], (1, sizes[2]), jnp.float32)
    p["be2"] = 0.1 * jax.random.normal(ks[7], (1, sizes[2]), jnp.float32)
    p["w3"] = (jax.random.normal(ks[8], (sizes[2], sizes[3]), jnp.float32)
               * (1.0 / math.sqrt(sizes[2])))
    p["b3"] = jax.random.normal(ks[9], (1, sizes[3]), jnp.float32) * 0.1
    return p


def _bn_relu_ref(h, g, b):
    m = jnp.mean(h, axis=0, keepdims=True)
    v = jnp.mean((h - m) ** 2, axis=0, keepdims=True)
    return jnp.maximum((h - m) / jnp.sqrt(v + _BN_EPS) * g + b, 0.0)


def se_forward_ref_f32(x, p):
    """Pure-JAX full-f32 reference with exact PyTorch semantics (biases kept)."""
    h = _bn_relu_ref(x @ p["w1"] + p["b1"], p["g1"], p["be1"])
    h = _bn_relu_ref(h @ p["w2"] + p["b2"], p["g2"], p["be2"])
    return jax.nn.sigmoid(h @ p["w3"] + p["b3"])


def se_forward_ref_mixed(x, p):
    """Pure-JAX reference mirroring the kernel's arithmetic exactly (bf16 MXU
    inputs, f32 accumulation, b1/b2 dropped, clamped single-pass variance)."""
    bf16 = jnp.bfloat16

    def dot(a, w):
        return jnp.dot(a.astype(bf16), w.astype(bf16),
                       preferred_element_type=jnp.float32)

    def bn_relu(h, g, b):
        m = jnp.mean(h, axis=0, keepdims=True)
        ms = jnp.mean(h * h, axis=0, keepdims=True)
        v = jnp.maximum(ms - m * m, 0.0)
        return jnp.maximum((h - m) * jax.lax.rsqrt(v + _BN_EPS) * g + b, 0.0)

    h = bn_relu(dot(x, p["w1"]), p["g1"], p["be1"])
    h = bn_relu(dot(h, p["w2"]), p["g2"], p["be2"])
    return jax.nn.sigmoid(dot(h, p["w3"]) + p["b3"])


if __name__ == "__main__":
    # Module-consistent small shapes: sE(input_dim=256, latent_dim=32,
    # layers=[128, 128]). B=256 fills the 256-row MXU on v6e/v7x (and is
    # harmless on v5e's 128-wide MXU).
    B, D_IN, LATENT = 256, 256, 32
    HIDDEN = [128, 128]

    key = jax.random.PRNGKey(0)
    kx, kp = jax.random.split(key)
    x = jax.random.normal(kx, (B, D_IN), jnp.float32)
    params = init_params(kp, D_IN, LATENT, HIDDEN)

    # One-time weight prep (bf16 cast / BN packing / lane-dense padding) OUTSIDE jit.
    prep = prepare_params(params)

    # TODO(synk): if this encoder is called many times on independent inputs,
    # batch those calls into one pallas_call with a leading grid axis to
    # amortize per-launch overhead (the whole forward is ~14 MFLOP).
    fwd = jax.jit(lambda x_, prep_: se_forward_padded(x_, prep_)[:, :LATENT])

    out = jax.block_until_ready(fwd(x, prep))
    assert out.shape == (B, LATENT)

    # Tight check vs a reference with the kernel's exact mixed-precision math.
    ref_mixed = se_forward_ref_mixed(x, params)
    assert jnp.allclose(out, ref_mixed, atol=2e-3, rtol=2e-3), (
        float(jnp.max(jnp.abs(out - ref_mixed))))

    # Loose sanity check vs the full-f32 PyTorch-semantics reference
    # (bf16 matmul inputs; sigmoid output compresses the error).
    ref_f32 = se_forward_ref_f32(x, params)
    assert jnp.allclose(out, ref_f32, atol=3e-2, rtol=3e-2), (
        float(jnp.max(jnp.abs(out - ref_f32))))

    print("KERNEL_OK")
</pallas_src>

<mosaic_0001>
module attributes {stable_mosaic.version = 11 : i64} {
  func.func @se_kernel(%arg0: memref<256x256xf32, #tpu.memory_space<vmem>>, %arg1: memref<256x128xbf16, #tpu.memory_space<vmem>>, %arg2: memref<2x128xf32, #tpu.memory_space<vmem>>, %arg3: memref<128x128xbf16, #tpu.memory_space<vmem>>, %arg4: memref<2x128xf32, #tpu.memory_space<vmem>>, %arg5: memref<128x128xbf16, #tpu.memory_space<vmem>>, %arg6: memref<1x128xf32, #tpu.memory_space<vmem>>, %arg7: memref<256x128xf32, #tpu.memory_space<vmem>>) attributes {dimension_semantics = [], scalar_prefetch = 0 : i64, scratch_operands = 0 : i64, tpu.core_type = #tpu.core_type<tc>} {
    %c0 = arith.constant 0 : index
    %c0_0 = arith.constant 0 : index
    %0 = vector.load %arg0[%c0, %c0_0] : memref<256x256xf32, #tpu.memory_space<vmem>>, vector<256x256xf32>
    %1 = arith.truncf %0 : vector<256x256xf32> to vector<256x256xbf16>
    %c0_1 = arith.constant 0 : index
    %c0_2 = arith.constant 0 : index
    %2 = vector.load %arg1[%c0_1, %c0_2] : memref<256x128xbf16, #tpu.memory_space<vmem>>, vector<256x128xbf16>
    %cst = arith.constant dense<0.000000e+00> : vector<256x128xf32>
    %3 = tpu.matmul %1, %2, %cst {dimension_numbers = #tpu.dot_dimension_numbers<[1], [0], [0], [1], [0, 0, 1, 1], [], []>} : vector<256x256xbf16>, vector<256x128xbf16>, vector<256x128xf32> -> vector<256x128xf32>
    %c0_3 = arith.constant 0 : index
    %c0_4 = arith.constant 0 : index
    %4 = vector.load %arg2[%c0_3, %c0_4] : memref<2x128xf32, #tpu.memory_space<vmem>>, vector<2x128xf32>
    %5 = vector.extract_strided_slice %4 {offsets = [0, 0], sizes = [1, 128], strides = [1, 1]} : vector<2x128xf32> to vector<1x128xf32>
    %6 = vector.extract_strided_slice %4 {offsets = [1, 0], sizes = [1, 128], strides = [1, 1]} : vector<2x128xf32> to vector<1x128xf32>
    %cst_5 = arith.constant dense<0.000000e+00> : vector<128xf32>
    %7 = vector.multi_reduction <add>, %3, %cst_5 [0] : vector<256x128xf32> to vector<128xf32>
    %8 = vector.shape_cast %7 : vector<128xf32> to vector<1x128xf32>
    %cst_6 = arith.constant 2.560000e+02 : f32
    %9 = vector.broadcast %cst_6 : f32 to vector<1x128xf32>
    %10 = arith.divf %8, %9 : vector<1x128xf32>
    %11 = arith.mulf %3, %3 : vector<256x128xf32>
    %cst_7 = arith.constant dense<0.000000e+00> : vector<128xf32>
    %12 = vector.multi_reduction <add>, %11, %cst_7 [0] : vector<256x128xf32> to vector<128xf32>
    %13 = vector.shape_cast %12 : vector<128xf32> to vector<1x128xf32>
    %cst_8 = arith.constant 2.560000e+02 : f32
    %14 = vector.broadcast %cst_8 : f32 to vector<1x128xf32>
    %15 = arith.divf %13, %14 : vector<1x128xf32>
    %16 = arith.mulf %10, %10 : vector<1x128xf32>
    %17 = arith.subf %15, %16 : vector<1x128xf32>
    %cst_9 = arith.constant 0.000000e+00 : f32
    %18 = vector.broadcast %cst_9 : f32 to vector<1x128xf32>
    %19 = arith.maximumf %17, %18 : vector<1x128xf32>
    %cst_10 = arith.constant 9.99999974E-6 : f32
    %20 = vector.broadcast %cst_10 : f32 to vector<1x128xf32>
    %21 = arith.addf %19, %20 : vector<1x128xf32>
    %22 = math.rsqrt %21 : vector<1x128xf32>
    %23 = arith.mulf %22, %5 : vector<1x128xf32>
    %24 = vector.broadcast %10 : vector<1x128xf32> to vector<256x128xf32>
    %25 = arith.subf %3, %24 : vector<256x128xf32>
    %26 = vector.broadcast %23 : vector<1x128xf32> to vector<256x128xf32>
    %27 = arith.mulf %25, %26 : vector<256x128xf32>
    %28 = vector.broadcast %6 : vector<1x128xf32> to vector<256x128xf32>
    %29 = arith.addf %27, %28 : vector<256x128xf32>
    %cst_11 = arith.constant 0.000000e+00 : f32
    %30 = vector.broadcast %cst_11 : f32 to vector<256x128xf32>
    %31 = arith.maximumf %29, %30 : vector<256x128xf32>
    %32 = arith.truncf %31 : vector<256x128xf32> to vector<256x128xbf16>
    %c0_12 = arith.constant 0 : index
    %c0_13 = arith.constant 0 : index
    %33 = vector.load %arg3[%c0_12, %c0_13] : memref<128x128xbf16, #tpu.memory_space<vmem>>, vector<128x128xbf16>
    %cst_14 = arith.constant dense<0.000000e+00> : vector<256x128xf32>
    %34 = tpu.matmul %32, %33, %cst_14 {dimension_numbers = #tpu.dot_dimension_numbers<[1], [0], [0], [1], [0, 0, 1, 1], [], []>} : vector<256x128xbf16>, vector<128x128xbf16>, vector<256x128xf32> -> vector<256x128xf32>
    %c0_15 = arith.constant 0 : index
    %c0_16 = arith.constant 0 : index
    %35 = vector.load %arg4[%c0_15, %c0_16] : memref<2x128xf32, #tpu.memory_space<vmem>>, vector<2x128xf32>
    %36 = vector.extract_strided_slice %35 {offsets = [0, 0], sizes = [1, 128], strides = [1, 1]} : vector<2x128xf32> to vector<1x128xf32>
    %37 = vector.extract_strided_slice %35 {offsets = [1, 0], sizes = [1, 128], strides = [1, 1]} : vector<2x128xf32> to vector<1x128xf32>
    %cst_17 = arith.constant dense<0.000000e+00> : vector<128xf32>
    %38 = vector.multi_reduction <add>, %34, %cst_17 [0] : vector<256x128xf32> to vector<128xf32>
    %39 = vector.shape_cast %38 : vector<128xf32> to vector<1x128xf32>
    %cst_18 = arith.constant 2.560000e+02 : f32
    %40 = vector.broadcast %cst_18 : f32 to vector<1x128xf32>
    %41 = arith.divf %39, %40 : vector<1x128xf32>
    %42 = arith.mulf %34, %34 : vector<256x128xf32>
    %cst_19 = arith.constant dense<0.000000e+00> : vector<128xf32>
    %43 = vector.multi_reduction <add>, %42, %cst_19 [0] : vector<256x128xf32> to vector<128xf32>
    %44 = vector.shape_cast %43 : vector<128xf32> to vector<1x128xf32>
    %cst_20 = arith.constant 2.560000e+02 : f32
    %45 = vector.broadcast %cst_20 : f32 to vector<1x128xf32>
    %46 = arith.divf %44, %45 : vector<1x128xf32>
    %47 = arith.mulf %41, %41 : vector<1x128xf32>
    %48 = arith.subf %46, %47 : vector<1x128xf32>
    %cst_21 = arith.constant 0.000000e+00 : f32
    %49 = vector.broadcast %cst_21 : f32 to vector<1x128xf32>
    %50 = arith.maximumf %48, %49 : vector<1x128xf32>
    %cst_22 = arith.constant 9.99999974E-6 : f32
    %51 = vector.broadcast %cst_22 : f32 to vector<1x128xf32>
    %52 = arith.addf %50, %51 : vector<1x128xf32>
    %53 = math.rsqrt %52 : vector<1x128xf32>
    %54 = arith.mulf %53, %36 : vector<1x128xf32>
    %55 = vector.broadcast %41 : vector<1x128xf32> to vector<256x128xf32>
    %56 = arith.subf %34, %55 : vector<256x128xf32>
    %57 = vector.broadcast %54 : vector<1x128xf32> to vector<256x128xf32>
    %58 = arith.mulf %56, %57 : vector<256x128xf32>
    %59 = vector.broadcast %37 : vector<1x128xf32> to vector<256x128xf32>
    %60 = arith.addf %58, %59 : vector<256x128xf32>
    %cst_23 = arith.constant 0.000000e+00 : f32
    %61 = vector.broadcast %cst_23 : f32 to vector<256x128xf32>
    %62 = arith.maximumf %60, %61 : vector<256x128xf32>
    %63 = arith.truncf %62 : vector<256x128xf32> to vector<256x128xbf16>
    %c0_24 = arith.constant 0 : index
    %c0_25 = arith.constant 0 : index
    %64 = vector.load %arg5[%c0_24, %c0_25] : memref<128x128xbf16, #tpu.memory_space<vmem>>, vector<128x128xbf16>
    %cst_26 = arith.constant dense<0.000000e+00> : vector<256x128xf32>
    %65 = tpu.matmul %63, %64, %cst_26 {dimension_numbers = #tpu.dot_dimension_numbers<[1], [0], [0], [1], [0, 0, 1, 1], [], []>} : vector<256x128xbf16>, vector<128x128xbf16>, vector<256x128xf32> -> vector<256x128xf32>
    %c0_27 = arith.constant 0 : index
    %c0_28 = arith.constant 0 : index
    %66 = vector.load %arg6[%c0_27, %c0_28] : memref<1x128xf32, #tpu.memory_space<vmem>>, vector<1x128xf32>
    %67 = vector.broadcast %66 : vector<1x128xf32> to vector<256x128xf32>
    %68 = arith.addf %65, %67 : vector<256x128xf32>
    %69 = arith.negf %68 : vector<256x128xf32>
    %70 = math.exp %69 : vector<256x128xf32>
    %cst_29 = arith.constant 1.000000e+00 : f32
    %71 = vector.broadcast %cst_29 : f32 to vector<256x128xf32>
    %72 = arith.addf %71, %70 : vector<256x128xf32>
    %73 = arith.divf %71, %72 : vector<256x128xf32>
    %c0_30 = arith.constant 0 : index
    %c0_31 = arith.constant 0 : index
    %74 = vector.load %arg7[%c0_30, %c0_31] : memref<256x128xf32, #tpu.memory_space<vmem>>, vector<256x128xf32>
    tpu.vector_store %arg7[%c0_30, %c0_31], %73 {strides = array<i32>} : memref<256x128xf32, #tpu.memory_space<vmem>>, vector<256x128xf32>,
    return
  }
}

</mosaic_0001>

<llo_original>
// kernel: _lambda_.1
$region0: #{_lambda_.1}
  #allocation0 [shape = 'u32[]', space=smem, size = 0x4, offset = 0x4, fixed_abs, tag = 'smem constant byte address 0x4 - core index']
  #allocation1 [shape = 'u32[72,128]{1,0:T(1,128)}', space=vmem, size = 0x9000, scoped, tag = 'internal scratch']
  %s0 = inlined_call_operand.hbm [shape: f32[256,256], index: 0, kind: input, shape index: {}]
  %s1 = inlined_call_operand.hbm [shape: bf16[256,128], index: 1, kind: input, shape index: {}]
  %s2 = inlined_call_operand.hbm [shape: f32[2,128], index: 2, kind: input, shape index: {}]
  %s3 = inlined_call_operand.hbm [shape: bf16[128,128], index: 3, kind: input, shape index: {}]
  %s4 = inlined_call_operand.vmem [shape: f32[2,128], index: 4, kind: input, shape index: {}]
  %s5 = inlined_call_operand.hbm [shape: bf16[128,128], index: 5, kind: input, shape index: {}]
  %s6 = inlined_call_operand.hbm [shape: f32[1,128], index: 6, kind: input, shape index: {}]
  %s7 = inlined_call_operand.vmem [shape: f32[256,128], index: 7, kind: output, shape index: {}]
  %s8 = sld [smem:[#allocation0]]
  $region62: #{_lambda_.1} parent=0
    _
  %s10 = ssub.s32 1, %s8
  %s11 = scalar_select 0, %s10, %s8
  $region1: #{_lambda_.1} parent=0
    #allocation2 [shape = 'u8[262144]{0}', space=vmem, size = 0x40000, scoped, tag = 'input window, operand 0, single buffered']
    #allocation3 [shape = 's32[1]{0}', space=sflag, size = 0x4, scoped, tag = 'scoped memory for _lambda_.1']
    #allocation4 [shape = 'u8[65536]{0}', space=vmem, size = 0x10000, scoped, tag = 'input window, operand 1, single buffered']
    #allocation5 [shape = 's32[1]{0}', space=sflag, size = 0x4, scoped, tag = 'scoped memory for _lambda_.1']
    #allocation6 [shape = 'u8[1024]{0}', space=vmem, size = 0x400, scoped, tag = 'input window, operand 2, single buffered']
    #allocation7 [shape = 'u8[32768]{0}', space=vmem, size = 0x8000, scoped, tag = 'input window, operand 3, single buffered']
    #allocation8 [shape = 's32[1]{0}', space=sflag, size = 0x4, scoped, tag = 'scoped memory for _lambda_.1']
    #allocation9 [shape = 'u8[32768]{0}', space=vmem, size = 0x8000, scoped, tag = 'input window, operand 5, single buffered']
    #allocation10 [shape = 'u8[512]{0}', space=vmem, size = 0x400, scoped, tag = 'input window, operand 6, single buffered']
    #allocation11 [shape = 's32[1]{0}', space=sflag, size = 0x4, scoped, tag = 'scoped memory for _lambda_.1']
    %12 = vsyncpa [#allocation3], 0
    %13 = vsyncpa [#allocation5], 0
    %14 = vsyncpa [#allocation8], 0
    %15 = vsyncpa [#allocation11], 0
    // Predicated region
    $region2: #{_lambda_.1} parent=1 // pred_check
      _
    $region3: #{_lambda_.1} parent=1 // pred_check_branch
      %17 = sbr.rel (0) target = $region5
    $region4: #{_lambda_.1} parent=1 // pred_region
      %19 = vsyncadd [#allocation3], 0
      %s20 = sshll.u32 %s0, 4
      %s21 = int_to_ptr.hbm [resolvable:$true] %s20
      %s22 = sshll.u32 [#allocation2], 4
      %s23 = int_to_ptr.vmem [resolvable:$true] %s22
      %28 = dma.hbm_to_vmem [thread:$0]  %s21, 8192, %s23, [#allocation3], 256, 256, 16
    $region5: #{_lambda_.1} parent=1 // pred_fallthru
      _
    // Predicated region
    $region6: #{_lambda_.1} parent=1 // pred_check
      _
    $region7: #{_lambda_.1} parent=1 // pred_check_branch
      %30 = sbr.rel (0) target = $region9
    $region8: #{_lambda_.1} parent=1 // pred_region
      %32 = vsyncadd [#allocation5], 0
      %s33 = sshll.u32 %s1, 4
      %s34 = int_to_ptr.hbm [resolvable:$true] %s33
      %s35 = sshll.u32 [#allocation4], 4
      %s36 = int_to_ptr.vmem [resolvable:$true] %s35
      %41 = dma.hbm_to_vmem [thread:$0]  %s34, 2048, %s36, [#allocation5], 64, 64, 4
    $region9: #{_lambda_.1} parent=1 // pred_fallthru
      _
    // Predicated region
    $region10: #{_lambda_.1} parent=1 // pred_check
      _
    $region11: #{_lambda_.1} parent=1 // pred_check_branch
      %43 = sbr.rel (0) target = $region13
    $region12: #{_lambda_.1} parent=1 // pred_region
      %45 = vsyncadd [#allocation5], 0
      %s47 = sshll.u32 %s2, 4
      %s48 = int_to_ptr.hbm [resolvable:$true] %s47
      %s49 = sshll.u32 [#allocation6], 4
      %s50 = int_to_ptr.vmem [resolvable:$true] %s49
      %52 = dma.hbm_to_vmem [thread:$0]  %s48, 32, %s50, [#allocation5]
    $region13: #{_lambda_.1} parent=1 // pred_fallthru
      _
    // Predicated region
    $region14: #{_lambda_.1} parent=1 // pred_check
      _
    $region15: #{_lambda_.1} parent=1 // pred_check_branch
      %54 = sbr.rel (0) target = $region17
    $region16: #{_lambda_.1} parent=1 // pred_region
      %56 = vsyncadd [#allocation8], 0
      %s57 = sshll.u32 %s3, 4
      %s58 = int_to_ptr.hbm [resolvable:$true] %s57
      %s59 = sshll.u32 [#allocation7], 4
      %s60 = int_to_ptr.vmem [resolvable:$true] %s59
      %65 = dma.hbm_to_vmem [thread:$0]  %s58, 1024, %s60, [#allocation8], 64, 64, 4
    $region17: #{_lambda_.1} parent=1 // pred_fallthru
      _
    // Predicated region
    $region18: #{_lambda_.1} parent=1 // pred_check
      _
    $region19: #{_lambda_.1} parent=1 // pred_check_branch
      %67 = sbr.rel (0) target = $region21
    $region20: #{_lambda_.1} parent=1 // pred_region
      _
    $region21: #{_lambda_.1} parent=1 // pred_fallthru
      _
    // Predicated region
    $region22: #{_lambda_.1} parent=1 // pred_check
      _
    $region23: #{_lambda_.1} parent=1 // pred_check_branch
      %69 = sbr.rel (0) target = $region25
    $region24: #{_lambda_.1} parent=1 // pred_region
      %71 = vsyncadd [#allocation8], 0
      %s72 = sshll.u32 %s5, 4
      %s73 = int_to_ptr.hbm [resolvable:$true] %s72
      %s74 = sshll.u32 [#allocation9], 4
      %s75 = int_to_ptr.vmem [resolvable:$true] %s74
      %80 = dma.hbm_to_vmem [thread:$0]  %s73, 1024, %s75, [#allocation8], 64, 64, 4
    $region25: #{_lambda_.1} parent=1 // pred_fallthru
      _
    // Predicated region
    $region26: #{_lambda_.1} parent=1 // pred_check
      _
    $region27: #{_lambda_.1} parent=1 // pred_check_branch
      %82 = sbr.rel (0) target = $region29
    $region28: #{_lambda_.1} parent=1 // pred_region
      %84 = vsyncadd [#allocation11], 0
      %s86 = sshll.u32 %s6, 4
      %s87 = int_to_ptr.hbm [resolvable:$true] %s86
      %s88 = sshll.u32 [#allocation10], 4
      %s89 = int_to_ptr.vmem [resolvable:$true] %s88
      %91 = dma.hbm_to_vmem [thread:$0]  %s87, 16, %s89, [#allocation11]
    $region29: #{_lambda_.1} parent=1 // pred_fallthru
      _
    // Predicated region
    $region30: #{_lambda_.1} parent=1 // pred_check
      _
    $region31: #{_lambda_.1} parent=1 // pred_check_branch
      %93 = sbr.rel (0) target = $region33
    $region32: #{_lambda_.1} parent=1 // pred_region
      %95 = dma.done [#allocation3], 8192
    $region33: #{_lambda_.1} parent=1 // pred_fallthru
      _
    // Predicated region
    $region34: #{_lambda_.1} parent=1 // pred_check
      _
    $region35: #{_lambda_.1} parent=1 // pred_check_branch
      %97 = sbr.rel (0) target = $region37
    $region36: #{_lambda_.1} parent=1 // pred_region
      %99 = dma.done [#allocation5], 2048
    $region37: #{_lambda_.1} parent=1 // pred_fallthru
      _
    // Predicated region
    $region38: #{_lambda_.1} parent=1 // pred_check
      _
    $region39: #{_lambda_.1} parent=1 // pred_check_branch
      %101 = sbr.rel (0) target = $region41
    $region40: #{_lambda_.1} parent=1 // pred_region
      %103 = dma.done [#allocation5], 32
    $region41: #{_lambda_.1} parent=1 // pred_fallthru
      _
    // Predicated region
    $region42: #{_lambda_.1} parent=1 // pred_check
      _
    $region43: #{_lambda_.1} parent=1 // pred_check_branch
      %105 = sbr.rel (0) target = $region45
    $region44: #{_lambda_.1} parent=1 // pred_region
      %107 = dma.done [#allocation8], 1024
    $region45: #{_lambda_.1} parent=1 // pred_fallthru
      _
    // Predicated region
    $region46: #{_lambda_.1} parent=1 // pred_check
      _
    $region47: #{_lambda_.1} parent=1 // pred_check_branch
      %109 = sbr.rel (0) target = $region49
    $region48: #{_lambda_.1} parent=1 // pred_region
      %111 = dma.done [#allocation8], 1024
    $region49: #{_lambda_.1} parent=1 // pred_fallthru
      _
    // Predicated region
    $region50: #{_lambda_.1} parent=1 // pred_check
      _
    $region51: #{_lambda_.1} parent=1 // pred_check_branch
      %113 = sbr.rel (0) target = $region53
    $region52: #{_lambda_.1} parent=1 // pred_region
      %115 = dma.done [#allocation11], 16
    $region53: #{_lambda_.1} parent=1 // pred_fallthru
      _
    %v116 = vld [vmem:[#allocation2] sm:$0xff]
    %v117 = vld [vmem:[#allocation2 + $0x8] sm:$0xff]
    %v118 = vld [vmem:[#allocation2 + $0x10] sm:$0xff]
    %v119 = vld [vmem:[#allocation2 + $0x18] sm:$0xff]
    %v120 = vld [vmem:[#allocation2 + $0x20] sm:$0xff]
    %v121 = vld [vmem:[#allocation2 + $0x28] sm:$0xff]
    %v122 = vld [vmem:[#allocation2 + $0x30] sm:$0xff]
    %v123 = vld [vmem:[#allocation2 + $0x38] sm:$0xff]
    %v124 = vld [vmem:[#allocation2 + $0x40] sm:$0xff]
    %v125 = vld [vmem:[#allocation2 + $0x48] sm:$0xff]
    %v126 = vld [vmem:[#allocation2 + $0x50] sm:$0xff]
    %v127 = vld [vmem:[#allocation2 + $0x58] sm:$0xff]
    %v128 = vld [vmem:[#allocation2 + $0x60] sm:$0xff]
    %v129 = vld [vmem:[#allocation2 + $0x68] sm:$0xff]
    %v130 = vld [vmem:[#allocation2 + $0x70] sm:$0xff]
    %v131 = vld [vmem:[#allocation2 + $0x78] sm:$0xff]
    %v132 = vld [vmem:[#allocation2 + $0x80] sm:$0xff]
    %v133 = vld [vmem:[#allocation2 + $0x88] sm:$0xff]
    %v134 = vld [vmem:[#allocation2 + $0x90] sm:$0xff]
    %v135 = vld [vmem:[#allocation2 + $0x98] sm:$0xff]
    %v136 = vld [vmem:[#allocation2 + $0xa0] sm:$0xff]
    %v137 = vld [vmem:[#allocation2 + $0xa8] sm:$0xff]
    %v138 = vld [vmem:[#allocation2 + $0xb0] sm:$0xff]
    %v139 = vld [vmem:[#allocation2 + $0xb8] sm:$0xff]
    %v140 = vld [vmem:[#allocation2 + $0xc0] sm:$0xff]
    %v141 = vld [vmem:[#allocation2 + $0xc8] sm:$0xff]
    %v142 = vld [vmem:[#allocation2 + $0xd0] sm:$0xff]
    %v143 = vld [vmem:[#allocation2 + $0xd8] sm:$0xff]
    %v144 = vld [vmem:[#allocation2 + $0xe0] sm:$0xff]
    %v145 = vld [vmem:[#allocation2 + $0xe8] sm:$0xff]
    %v146 = vld [vmem:[#allocation2 + $0xf0] sm:$0xff]
    %v147 = vld [vmem:[#allocation2 + $0xf8] sm:$0xff]
    %v148 = vld [vmem:[#allocation2 + $0x100] sm:$0xff]
    %v149 = vld [vmem:[#allocation2 + $0x108] sm:$0xff]
    %v150 = vld [vmem:[#allocation2 + $0x110] sm:$0xff]
    %v151 = vld [vmem:[#allocation2 + $0x118] sm:$0xff]
    %v152 = vld [vmem:[#allocation2 + $0x120] sm:$0xff]
    %v153 = vld [vmem:[#allocation2 + $0x128] sm:$0xff]
    %v154 = vld [vmem:[#allocation2 + $0x130] sm:$0xff]
    %v155 = vld [vmem:[#allocation2 + $0x138] sm:$0xff]
    %v156 = vld [vmem:[#allocation2 + $0x140] sm:$0xff]
    %v157 = vld [vmem:[#allocation2 + $0x148] sm:$0xff]
    %v158 = vld [vmem:[#allocation2 + $0x150] sm:$0xff]
    %v159 = vld [vmem:[#allocation2 + $0x158] sm:$0xff]
    %v160 = vld [vmem:[#allocation2 + $0x160] sm:$0xff]
    %v161 = vld [vmem:[#allocation2 + $0x168] sm:$0xff]
    %v162 = vld [vmem:[#allocation2 + $0x170] sm:$0xff]
    %v163 = vld [vmem:[#allocation2 + $0x178] sm:$0xff]
    %v164 = vld [vmem:[#allocation2 + $0x180] sm:$0xff]
    %v165 = vld [vmem:[#allocation2 + $0x188] sm:$0xff]
    %v166 = vld [vmem:[#allocation2 + $0x190] sm:$0xff]
    %v167 = vld [vmem:[#allocation2 + $0x198] sm:$0xff]
    %v168 = vld [vmem:[#allocation2 + $0x1a0] sm:$0xff]
    %v169 = vld [vmem:[#allocation2 + $0x1a8] sm:$0xff]
    %v170 = vld [vmem:[#allocation2 + $0x1b0] sm:$0xff]
    %v171 = vld [vmem:[#allocation2 + $0x1b8] sm:$0xff]
    %v172 = vld [vmem:[#allocation2 + $0x1c0] sm:$0xff]
    %v173 = vld [vmem:[#allocation2 + $0x1c8] sm:$0xff]
    %v174 = vld [vmem:[#allocation2 + $0x1d0] sm:$0xff]
    %v175 = vld [vmem:[#allocation2 + $0x1d8] sm:$0xff]
    %v176 = vld [vmem:[#allocation2 + $0x1e0] sm:$0xff]
    %v177 = vld [vmem:[#allocation2 + $0x1e8] sm:$0xff]
    %v178 = vld [vmem:[#allocation2 + $0x1f0] sm:$0xff]
    %v179 = vld [vmem:[#allocation2 + $0x1f8] sm:$0xff]
    %v180 = vpack.c.bf16 %v118, %v116
    %v181 = vpack.c.bf16 %v119, %v117
    %v182 = vpack.c.bf16 %v122, %v120
    %v183 = vpack.c.bf16 %v123, %v121
    %v184 = vpack.c.bf16 %v126, %v124
    %v185 = vpack.c.bf16 %v127, %v125
    %v186 = vpack.c.bf16 %v130, %v128
    %v187 = vpack.c.bf16 %v131, %v129
    %v188 = vpack.c.bf16 %v134, %v132
    %v189 = vpack.c.bf16 %v135, %v133
    %v190 = vpack.c.bf16 %v138, %v136
    %v191 = vpack.c.bf16 %v139, %v137
    %v192 = vpack.c.bf16 %v142, %v140
    %v193 = vpack.c.bf16 %v143, %v141
    %v194 = vpack.c.bf16 %v146, %v144
    %v195 = vpack.c.bf16 %v147, %v145
    %v196 = vpack.c.bf16 %v150, %v148
    %v197 = vpack.c.bf16 %v151, %v149
    %v198 = vpack.c.bf16 %v154, %v152
    %v199 = vpack.c.bf16 %v155, %v153
    %v200 = vpack.c.bf16 %v158, %v156
    %v201 = vpack.c.bf16 %v159, %v157
    %v202 = vpack.c.bf16 %v162, %v160
    %v203 = vpack.c.bf16 %v163, %v161
    %v204 = vpack.c.bf16 %v166, %v164
    %v205 = vpack.c.bf16 %v167, %v165
    %v206 = vpack.c.bf16 %v170, %v168
    %v207 = vpack.c.bf16 %v171, %v169
    %v208 = vpack.c.bf16 %v174, %v172
    %v209 = vpack.c.bf16 %v175, %v173
    %v210 = vpack.c.bf16 %v178, %v176
    %v211 = vpack.c.bf16 %v179, %v177
    %v212 = vld [vmem:[#allocation4] sm:$0xf]
    %v213 = vld [vmem:[#allocation4 + $0x4] sm:$0xf]
    %v214 = vld [vmem:[#allocation4 + $0x8] sm:$0xf]
    %v215 = vld [vmem:[#allocation4 + $0xc] sm:$0xf]
    %v216 = vld [vmem:[#allocation4 + $0x10] sm:$0xf]
    %v217 = vld [vmem:[#allocation4 + $0x14] sm:$0xf]
    %v218 = vld [vmem:[#allocation4 + $0x18] sm:$0xf]
    %v219 = vld [vmem:[#allocation4 + $0x1c] sm:$0xf]
    %v220 = vld [vmem:[#allocation4 + $0x20] sm:$0xf]
    %v221 = vld [vmem:[#allocation4 + $0x24] sm:$0xf]
    %v222 = vld [vmem:[#allocation4 + $0x28] sm:$0xf]
    %v223 = vld [vmem:[#allocation4 + $0x2c] sm:$0xf]
    %v224 = vld [vmem:[#allocation4 + $0x30] sm:$0xf]
    %v225 = vld [vmem:[#allocation4 + $0x34] sm:$0xf]
    %v226 = vld [vmem:[#allocation4 + $0x38] sm:$0xf]
    %v227 = vld [vmem:[#allocation4 + $0x3c] sm:$0xf]
    %v228 = vld [vmem:[#allocation4 + $0x40] sm:$0xf]
    %v229 = vld [vmem:[#allocation4 + $0x44] sm:$0xf]
    %v230 = vld [vmem:[#allocation4 + $0x48] sm:$0xf]
    %v231 = vld [vmem:[#allocation4 + $0x4c] sm:$0xf]
    %v232 = vld [vmem:[#allocation4 + $0x50] sm:$0xf]
    %v233 = vld [vmem:[#allocation4 + $0x54] sm:$0xf]
    %v234 = vld [vmem:[#allocation4 + $0x58] sm:$0xf]
    %v235 = vld [vmem:[#allocation4 + $0x5c] sm:$0xf]
    %v236 = vld [vmem:[#allocation4 + $0x60] sm:$0xf]
    %v237 = vld [vmem:[#allocation4 + $0x64] sm:$0xf]
    %v238 = vld [vmem:[#allocation4 + $0x68] sm:$0xf]
    %v239 = vld [vmem:[#allocation4 + $0x6c] sm:$0xf]
    %v240 = vld [vmem:[#allocation4 + $0x70] sm:$0xf]
    %v241 = vld [vmem:[#allocation4 + $0x74] sm:$0xf]
    %v242 = vld [vmem:[#allocation4 + $0x78] sm:$0xf]
    %v243 = vld [vmem:[#allocation4 + $0x7c] sm:$0xf]
    %v276 = vunpack.c.l.b16 %v212
    %v277 = vunpack.c.l.b16 %v213
    %v278 = vunpack.c.l.b16 %v214
    %v279 = vunpack.c.l.b16 %v215
    %v280 = vunpack.c.l.b16 %v216
    %v281 = vunpack.c.l.b16 %v217
    %v282 = vunpack.c.l.b16 %v218
    %v283 = vunpack.c.l.b16 %v219
    %v284 = vunpack.c.l.b16 %v220
    %v285 = vunpack.c.l.b16 %v221
    %v286 = vunpack.c.l.b16 %v222
    %v287 = vunpack.c.l.b16 %v223
    %v288 = vunpack.c.l.b16 %v224
    %v289 = vunpack.c.l.b16 %v225
    %v290 = vunpack.c.l.b16 %v226
    %v291 = vunpack.c.l.b16 %v227
    %v292 = vunpack.c.l.b16 %v228
    %v293 = vunpack.c.l.b16 %v229
    %v294 = vunpack.c.l.b16 %v230
    %v295 = vunpack.c.l.b16 %v231
    %v296 = vunpack.c.l.b16 %v232
    %v297 = vunpack.c.l.b16 %v233
    %v298 = vunpack.c.l.b16 %v234
    %v299 = vunpack.c.l.b16 %v235
    %v300 = vunpack.c.l.b16 %v236
    %v301 = vunpack.c.l.b16 %v237
    %v302 = vunpack.c.l.b16 %v238
    %v303 = vunpack.c.l.b16 %v239
    %v304 = vunpack.c.l.b16 %v240
    %v305 = vunpack.c.l.b16 %v241
    %v306 = vunpack.c.l.b16 %v242
    %v307 = vunpack.c.l.b16 %v243
    %v308 = vpack.c.b16 %v277, %v276
    %v309 = vpack.c.b16 %v279, %v278
    %v310 = vpack.c.b16 %v281, %v280
    %v311 = vpack.c.b16 %v283, %v282
    %v312 = vpack.c.b16 %v285, %v284
    %v313 = vpack.c.b16 %v287, %v286
    %v314 = vpack.c.b16 %v289, %v288
    %v315 = vpack.c.b16 %v291, %v290
    %v316 = vpack.c.b16 %v293, %v292
    %v317 = vpack.c.b16 %v295, %v294
    %v318 = vpack.c.b16 %v297, %v296
    %v319 = vpack.c.b16 %v299, %v298
    %v320 = vpack.c.b16 %v301, %v300
    %v321 = vpack.c.b16 %v303, %v302
    %v322 = vpack.c.b16 %v305, %v304
    %v323 = vpack.c.b16 %v307, %v306
    %340 = vmatpush.bf16.msra.mxu0 %v315
    %341 = vmatpush.bf16.msra.mxu0 %v314
    %342 = vmatpush.bf16.msra.mxu0 %v313
    %343 = vmatpush.bf16.msra.mxu0 %v312
    %344 = vmatpush.bf16.msra.mxu0 %v311
    %345 = vmatpush.bf16.msra.mxu0 %v310
    %346 = vmatpush.bf16.msra.mxu0 %v309
    %347 = vmatpush.bf16.msra.mxu0 %v308
    %348 = vmatmul.bf16.gmra.mxu0 %v180
    %v349 = vpop.f32.mrf.mxu0
    %v350 = vadd.f32 0.0, %v349
    %v351 = vpop.f32.mrf.mxu0
    %v352 = vadd.f32 0.0, %v351
    %353 = vmatmul.bf16.gmra.mxu0 %v182
    %v354 = vpop.f32.mrf.mxu0
    %v355 = vadd.f32 0.0, %v354
    %v356 = vpop.f32.mrf.mxu0
    %v357 = vadd.f32 0.0, %v356
    %358 = vmatmul.bf16.gmra.mxu0 %v184
    %v359 = vpop.f32.mrf.mxu0
    %v360 = vadd.f32 0.0, %v359
    %v361 = vpop.f32.mrf.mxu0
    %v362 = vadd.f32 0.0, %v361
    %363 = vmatmul.bf16.gmra.mxu0 %v186
    %v364 = vpop.f32.mrf.mxu0
    %v365 = vadd.f32 0.0, %v364
    %v366 = vpop.f32.mrf.mxu0
    %v367 = vadd.f32 0.0, %v366
    %368 = vmatmul.bf16.gmra.mxu0 %v188
    %v369 = vpop.f32.mrf.mxu0
    %v370 = vadd.f32 0.0, %v369
    %v371 = vpop.f32.mrf.mxu0
    %v372 = vadd.f32 0.0, %v371
    %373 = vmatmul.bf16.gmra.mxu0 %v190
    %v374 = vpop.f32.mrf.mxu0
    %v375 = vadd.f32 0.0, %v374
    %v376 = vpop.f32.mrf.mxu0
    %v377 = vadd.f32 0.0, %v376
    %378 = vmatmul.bf16.gmra.mxu0 %v192
    %v379 = vpop.f32.mrf.mxu0
    %v380 = vadd.f32 0.0, %v379
    %v381 = vpop.f32.mrf.mxu0
    %v382 = vadd.f32 0.0, %v381
    %383 = vmatmul.bf16.gmra.mxu0 %v194
    %v384 = vpop.f32.mrf.mxu0
    %v385 = vadd.f32 0.0, %v384
    %v386 = vpop.f32.mrf.mxu0
    %v387 = vadd.f32 0.0, %v386
    %388 = vmatmul.bf16.gmra.mxu0 %v196
    %v389 = vpop.f32.mrf.mxu0
    %v390 = vadd.f32 0.0, %v389
    %v391 = vpop.f32.mrf.mxu0
    %v392 = vadd.f32 0.0, %v391
    %393 = vmatmul.bf16.gmra.mxu0 %v198
    %v394 = vpop.f32.mrf.mxu0
    %v395 = vadd.f32 0.0, %v394
    %v396 = vpop.f32.mrf.mxu0
    %v397 = vadd.f32 0.0, %v396
    %398 = vmatmul.bf16.gmra.mxu0 %v200
    %v399 = vpop.f32.mrf.mxu0
    %v400 = vadd.f32 0.0, %v399
    %v401 = vpop.f32.mrf.mxu0
    %v402 = vadd.f32 0.0, %v401
    %403 = vmatmul.bf16.gmra.mxu0 %v202
    %v404 = vpop.f32.mrf.mxu0
    %v405 = vadd.f32 0.0, %v404
    %v406 = vpop.f32.mrf.mxu0
    %v407 = vadd.f32 0.0, %v406
    %408 = vmatmul.bf16.gmra.mxu0 %v204
    %v409 = vpop.f32.mrf.mxu0
    %v410 = vadd.f32 0.0, %v409
    %v411 = vpop.f32.mrf.mxu0
    %v412 = vadd.f32 0.0, %v411
    %413 = vmatmul.bf16.gmra.mxu0 %v206
    %v414 = vpop.f32.mrf.mxu0
    %v415 = vadd.f32 0.0, %v414
    %v416 = vpop.f32.mrf.mxu0
    %v417 = vadd.f32 0.0, %v416
    %418 = vmatmul.bf16.gmra.mxu0 %v208
    %v419 = vpop.f32.mrf.mxu0
    %v420 = vadd.f32 0.0, %v419
    %v421 = vpop.f32.mrf.mxu0
    %v422 = vadd.f32 0.0, %v421
    %423 = vmatmul.bf16.gmra.mxu0 %v210
    %v424 = vpop.f32.mrf.mxu0
    %v425 = vadd.f32 0.0, %v424
    %v426 = vpop.f32.mrf.mxu0
    %v427 = vadd.f32 0.0, %v426
    %428 = vdwg.mxu0
    %429 = vmatpush.bf16.msra.mxu0 %v323
    %430 = vmatpush.bf16.msra.mxu0 %v322
    %431 = vmatpush.bf16.msra.mxu0 %v321
    %432 = vmatpush.bf16.msra.mxu0 %v320
    %433 = vmatpush.bf16.msra.mxu0 %v319
    %434 = vmatpush.bf16.msra.mxu0 %v318
    %435 = vmatpush.bf16.msra.mxu0 %v317
    %436 = vmatpush.bf16.msra.mxu0 %v316
    %437 = vmatmul.bf16.gmra.mxu0 %v181
    %v438 = vpop.f32.mrf.mxu0
    %v439 = vadd.f32 %v350, %v438
    %v440 = vpop.f32.mrf.mxu0
    %v441 = vadd.f32 %v352, %v440
    %442 = vmatmul.bf16.gmra.mxu0 %v183
    %v443 = vpop.f32.mrf.mxu0
    %v444 = vadd.f32 %v355, %v443
    %v445 = vpop.f32.mrf.mxu0
    %v446 = vadd.f32 %v357, %v445
    %447 = vmatmul.bf16.gmra.mxu0 %v185
    %v448 = vpop.f32.mrf.mxu0
    %v449 = vadd.f32 %v360, %v448
    %v450 = vpop.f32.mrf.mxu0
    %v451 = vadd.f32 %v362, %v450
    %452 = vmatmul.bf16.gmra.mxu0 %v187
    %v453 = vpop.f32.mrf.mxu0
    %v454 = vadd.f32 %v365, %v453
    %v455 = vpop.f32.mrf.mxu0
    %v456 = vadd.f32 %v367, %v455
    %457 = vmatmul.bf16.gmra.mxu0 %v189
    %v458 = vpop.f32.mrf.mxu0
    %v459 = vadd.f32 %v370, %v458
    %v460 = vpop.f32.mrf.mxu0
    %v461 = vadd.f32 %v372, %v460
    %462 = vmatmul.bf16.gmra.mxu0 %v191
    %v463 = vpop.f32.mrf.mxu0
    %v464 = vadd.f32 %v375, %v463
    %v465 = vpop.f32.mrf.mxu0
    %v466 = vadd.f32 %v377, %v465
    %467 = vmatmul.bf16.gmra.mxu0 %v193
    %v468 = vpop.f32.mrf.mxu0
    %v469 = vadd.f32 %v380, %v468
    %v470 = vpop.f32.mrf.mxu0
    %v471 = vadd.f32 %v382, %v470
    %472 = vmatmul.bf16.gmra.mxu0 %v195
    %v473 = vpop.f32.mrf.mxu0
    %v474 = vadd.f32 %v385, %v473
    %v475 = vpop.f32.mrf.mxu0
    %v476 = vadd.f32 %v387, %v475
    %477 = vmatmul.bf16.gmra.mxu0 %v197
    %v478 = vpop.f32.mrf.mxu0
    %v479 = vadd.f32 %v390, %v478
    %v480 = vpop.f32.mrf.mxu0
    %v481 = vadd.f32 %v392, %v480
    %482 = vmatmul.bf16.gmra.mxu0 %v199
    %v483 = vpop.f32.mrf.mxu0
    %v484 = vadd.f32 %v395, %v483
    %v485 = vpop.f32.mrf.mxu0
    %v486 = vadd.f32 %v397, %v485
    %487 = vmatmul.bf16.gmra.mxu0 %v201
    %v488 = vpop.f32.mrf.mxu0
    %v489 = vadd.f32 %v400, %v488
    %v490 = vpop.f32.mrf.mxu0
    %v491 = vadd.f32 %v402, %v490
    %492 = vmatmul.bf16.gmra.mxu0 %v203
    %v493 = vpop.f32.mrf.mxu0
    %v494 = vadd.f32 %v405, %v493
    %v495 = vpop.f32.mrf.mxu0
    %v496 = vadd.f32 %v407, %v495
    %497 = vmatmul.bf16.gmra.mxu0 %v205
    %v498 = vpop.f32.mrf.mxu0
    %v499 = vadd.f32 %v410, %v498
    %v500 = vpop.f32.mrf.mxu0
    %v501 = vadd.f32 %v412, %v500
    %502 = vmatmul.bf16.gmra.mxu0 %v207
    %v503 = vpop.f32.mrf.mxu0
    %v504 = vadd.f32 %v415, %v503
    %v505 = vpop.f32.mrf.mxu0
    %v506 = vadd.f32 %v417, %v505
    %507 = vmatmul.bf16.gmra.mxu0 %v209
    %v508 = vpop.f32.mrf.mxu0
    %v509 = vadd.f32 %v420, %v508
    %v510 = vpop.f32.mrf.mxu0
    %v511 = vadd.f32 %v422, %v510
    %512 = vmatmul.bf16.gmra.mxu0 %v211
    %v513 = vpop.f32.mrf.mxu0
    %v514 = vadd.f32 %v425, %v513
    %v515 = vpop.f32.mrf.mxu0
    %v516 = vadd.f32 %v427, %v515
    %517 = vdwg.mxu0
    %v518 = vld [vmem:[#allocation6] sm:$0x3]
    %v519 = vadd.f32 %v439, %v441
    %v520 = vadd.f32 %v519, %v444
    %v521 = vadd.f32 %v520, %v446
    %v522 = vadd.f32 %v521, %v449
    %v523 = vadd.f32 %v522, %v451
    %v524 = vadd.f32 %v523, %v454
    %v525 = vadd.f32 %v524, %v456
    %v526 = vadd.f32 %v525, %v459
    %v527 = vadd.f32 %v526, %v461
    %v528 = vadd.f32 %v527, %v464
    %v529 = vadd.f32 %v528, %v466
    %v530 = vadd.f32 %v529, %v469
    %v531 = vadd.f32 %v530, %v471
    %v532 = vadd.f32 %v531, %v474
    %v533 = vadd.f32 %v532, %v476
    %v534 = vadd.f32 %v533, %v479
    %v535 = vadd.f32 %v534, %v481
    %v536 = vadd.f32 %v535, %v484
    %v537 = vadd.f32 %v536, %v486
    %v538 = vadd.f32 %v537, %v489
    %v539 = vadd.f32 %v538, %v491
    %v540 = vadd.f32 %v539, %v494
    %v541 = vadd.f32 %v540, %v496
    %v542 = vadd.f32 %v541, %v499
    %v543 = vadd.f32 %v542, %v501
    %v544 = vadd.f32 %v543, %v504
    %v545 = vadd.f32 %v544, %v506
    %v546 = vadd.f32 %v545, %v509
    %v547 = vadd.f32 %v546, %v511
    %v548 = vadd.f32 %v547, %v514
    %v549 = vadd.f32 %v548, %v516
    %v550 = vrot.slane %v549, 4
    %v551 = vadd.f32 %v549, %v550
    %v552 = vrot.slane %v551, 2
    %v553 = vadd.f32 %v551, %v552
    %v554 = vrot.slane %v553, 1
    %v555 = vadd.f32 %v553, %v554
    %v556 = vrcp.pop 256.0
    %v557 = vmul.f32 256.0, %v556
    %v558 = vsub.f32 1.0, %v557
    %v559 = vmul.f32 %v556, %v558
    %v560 = vadd.f32 %v556, %v559
    %vm561 = vweird.f32 %v556
    %v562 = vsel %vm561, %v556, %v560
    %v563 = vmul.f32 %v555, %v562
    %v564 = vmul.f32 %v439, %v439
    %v565 = vmul.f32 %v441, %v441
    %v566 = vmul.f32 %v444, %v444
    %v567 = vmul.f32 %v446, %v446
    %v568 = vmul.f32 %v449, %v449
    %v569 = vmul.f32 %v451, %v451
    %v570 = vmul.f32 %v454, %v454
    %v571 = vmul.f32 %v456, %v456
    %v572 = vmul.f32 %v459, %v459
    %v573 = vmul.f32 %v461, %v461
    %v574 = vmul.f32 %v464, %v464
    %v575 = vmul.f32 %v466, %v466
    %v576 = vmul.f32 %v469, %v469
    %v577 = vmul.f32 %v471, %v471
    %v578 = vmul.f32 %v474, %v474
    %v579 = vmul.f32 %v476, %v476
    %v580 = vmul.f32 %v479, %v479
    %v581 = vmul.f32 %v481, %v481
    %v582 = vmul.f32 %v484, %v484
    %v583 = vmul.f32 %v486, %v486
    %v584 = vmul.f32 %v489, %v489
    %v585 = vmul.f32 %v491, %v491
    %v586 = vmul.f32 %v494, %v494
    %v587 = vmul.f32 %v496, %v496
    %v588 = vmul.f32 %v499, %v499
    %v589 = vmul.f32 %v501, %v501
    %v590 = vmul.f32 %v504, %v504
    %v591 = vmul.f32 %v506, %v506
    %v592 = vmul.f32 %v509, %v509
    %v593 = vmul.f32 %v511, %v511
    %v594 = vmul.f32 %v514, %v514
    %v595 = vmul.f32 %v516, %v516
    %v596 = vadd.f32 %v564, %v565
    %v597 = vadd.f32 %v596, %v566
    %v598 = vadd.f32 %v597, %v567
    %v599 = vadd.f32 %v598, %v568
    %v600 = vadd.f32 %v599, %v569
    %v601 = vadd.f32 %v600, %v570
    %v602 = vadd.f32 %v601, %v571
    %v603 = vadd.f32 %v602, %v572
    %v604 = vadd.f32 %v603, %v573
    %v605 = vadd.f32 %v604, %v574
    %v606 = vadd.f32 %v605, %v575
    %v607 = vadd.f32 %v606, %v576
    %v608 = vadd.f32 %v607, %v577
    %v609 = vadd.f32 %v608, %v578
    %v610 = vadd.f32 %v609, %v579
    %v611 = vadd.f32 %v610, %v580
    %v612 = vadd.f32 %v611, %v581
    %v613 = vadd.f32 %v612, %v582
    %v614 = vadd.f32 %v613, %v583
    %v615 = vadd.f32 %v614, %v584
    %v616 = vadd.f32 %v615, %v585
    %v617 = vadd.f32 %v616, %v586
    %v618 = vadd.f32 %v617, %v587
    %v619 = vadd.f32 %v618, %v588
    %v620 = vadd.f32 %v619, %v589
    %v621 = vadd.f32 %v620, %v590
    %v622 = vadd.f32 %v621, %v591
    %v623 = vadd.f32 %v622, %v592
    %v624 = vadd.f32 %v623, %v593
    %v625 = vadd.f32 %v624, %v594
    %v626 = vadd.f32 %v625, %v595
    %v627 = vrot.slane %v626, 4
    %v628 = vadd.f32 %v626, %v627
    %v629 = vrot.slane %v628, 2
    %v630 = vadd.f32 %v628, %v629
    %v631 = vrot.slane %v630, 1
    %v632 = vadd.f32 %v630, %v631
    %v633 = vmul.f32 %v632, %v562
    %v634 = vmul.f32 %v563, %v563
    %v635 = vsub.f32 %v633, %v634
    %v636 = vmax.f32 %v635, 0.0
    %v637 = vadd.f32 %v636, 1e-05
    %v638 = vrsqrt.pop %v637
    %v639 = vmul.f32 %v638, %v637
    %v640 = vmul.f32 %v639, %v638
    %v641 = vmul.f32 0.5, %v640
    %v642 = vsub.f32 1.5, %v641
    %v643 = vmul.f32 %v638, %v642
    %vm644 = vweird.f32 %v637
    %vm645 = vweird.f32 %v638
    %vm646 = vmor %vm644, %vm645
    %v647 = vsel %vm646, %v638, %v643
    %v648 = vmul.f32 %v647, %v518
    %v649 = vsub.f32 %v439, %v563
    %v650 = vsub.f32 %v441, %v563
    %v651 = vsub.f32 %v444, %v563
    %v652 = vsub.f32 %v446, %v563
    %v653 = vsub.f32 %v449, %v563
    %v654 = vsub.f32 %v451, %v563
    %v655 = vsub.f32 %v454, %v563
    %v656 = vsub.f32 %v456, %v563
    %v657 = vsub.f32 %v459, %v563
    %v658 = vsub.f32 %v461, %v563
    %v659 = vsub.f32 %v464, %v563
    %v660 = vsub.f32 %v466, %v563
    %v661 = vsub.f32 %v469, %v563
    %v662 = vsub.f32 %v471, %v563
    %v663 = vsub.f32 %v474, %v563
    %v664 = vsub.f32 %v476, %v563
    %v665 = vsub.f32 %v479, %v563
    %v666 = vsub.f32 %v481, %v563
    %v667 = vsub.f32 %v484, %v563
    %v668 = vsub.f32 %v486, %v563
    %v669 = vsub.f32 %v489, %v563
    %v670 = vsub.f32 %v491, %v563
    %v671 = vsub.f32 %v494, %v563
    %v672 = vsub.f32 %v496, %v563
    %v673 = vsub.f32 %v499, %v563
    %v674 = vsub.f32 %v501, %v563
    %v675 = vsub.f32 %v504, %v563
    %v676 = vsub.f32 %v506, %v563
    %v677 = vsub.f32 %v509, %v563
    %v678 = vsub.f32 %v511, %v563
    %v679 = vsub.f32 %v514, %v563
    %v680 = vsub.f32 %v516, %v563
    %v681 = vperm.slane %v648, 0
    %v682 = vmul.f32 %v649, %v681
    %v683 = vmul.f32 %v650, %v681
    %v684 = vmul.f32 %v651, %v681
    %v685 = vmul.f32 %v652, %v681
    %v686 = vmul.f32 %v653, %v681
    %v687 = vmul.f32 %v654, %v681
    %v688 = vmul.f32 %v655, %v681
    %v689 = vmul.f32 %v656, %v681
    %v690 = vmul.f32 %v657, %v681
    %v691 = vmul.f32 %v658, %v681
    %v692 = vmul.f32 %v659, %v681
    %v693 = vmul.f32 %v660, %v681
    %v694 = vmul.f32 %v661, %v681
    %v695 = vmul.f32 %v662, %v681
    %v696 = vmul.f32 %v663, %v681
    %v697 = vmul.f32 %v664, %v681
    %v698 = vmul.f32 %v665, %v681
    %v699 = vmul.f32 %v666, %v681
    %v700 = vmul.f32 %v667, %v681
    %v701 = vmul.f32 %v668, %v681
    %v702 = vmul.f32 %v669, %v681
    %v703 = vmul.f32 %v670, %v681
    %v704 = vmul.f32 %v671, %v681
    %v705 = vmul.f32 %v672, %v681
    %v706 = vmul.f32 %v673, %v681
    %v707 = vmul.f32 %v674, %v681
    %v708 = vmul.f32 %v675, %v681
    %v709 = vmul.f32 %v676, %v681
    %v710 = vmul.f32 %v677, %v681
    %v711 = vmul.f32 %v678, %v681
    %v712 = vmul.f32 %v679, %v681
    %v713 = vmul.f32 %v680, %v681
    %v714 = vperm.slane %v518, 1
    %v715 = vadd.f32 %v682, %v714
    %v716 = vadd.f32 %v683, %v714
    %v717 = vadd.f32 %v684, %v714
    %v718 = vadd.f32 %v685, %v714
    %v719 = vadd.f32 %v686, %v714
    %v720 = vadd.f32 %v687, %v714
    %v721 = vadd.f32 %v688, %v714
    %v722 = vadd.f32 %v689, %v714
    %v723 = vadd.f32 %v690, %v714
    %v724 = vadd.f32 %v691, %v714
    %v725 = vadd.f32 %v692, %v714
    %v726 = vadd.f32 %v693, %v714
    %v727 = vadd.f32 %v694, %v714
    %v728 = vadd.f32 %v695, %v714
    %v729 = vadd.f32 %v696, %v714
    %v730 = vadd.f32 %v697, %v714
    %v731 = vadd.f32 %v698, %v714
    %v732 = vadd.f32 %v699, %v714
    %v733 = vadd.f32 %v700, %v714
    %v734 = vadd.f32 %v701, %v714
    %v735 = vadd.f32 %v702, %v714
    %v736 = vadd.f32 %v703, %v714
    %v737 = vadd.f32 %v704, %v714
    %v738 = vadd.f32 %v705, %v714
    %v739 = vadd.f32 %v706, %v714
    %v740 = vadd.f32 %v707, %v714
    %v741 = vadd.f32 %v708, %v714
    %v742 = vadd.f32 %v709, %v714
    %v743 = vadd.f32 %v710, %v714
    %v744 = vadd.f32 %v711, %v714
    %v745 = vadd.f32 %v712, %v714
    %v746 = vadd.f32 %v713, %v714
    %v747 = vmax.f32 %v715, 0.0
    %v748 = vmax.f32 %v716, 0.0
    %v749 = vmax.f32 %v717, 0.0
    %v750 = vmax.f32 %v718, 0.0
    %v751 = vmax.f32 %v719, 0.0
    %v752 = vmax.f32 %v720, 0.0
    %v753 = vmax.f32 %v721, 0.0
    %v754 = vmax.f32 %v722, 0.0
    %v755 = vmax.f32 %v723, 0.0
    %v756 = vmax.f32 %v724, 0.0
    %v757 = vmax.f32 %v725, 0.0
    %v758 = vmax.f32 %v726, 0.0
    %v759 = vmax.f32 %v727, 0.0
    %v760 = vmax.f32 %v728, 0.0
    %v761 = vmax.f32 %v729, 0.0
    %v762 = vmax.f32 %v730, 0.0
    %v763 = vmax.f32 %v731, 0.0
    %v764 = vmax.f32 %v732, 0.0
    %v765 = vmax.f32 %v733, 0.0
    %v766 = vmax.f32 %v734, 0.0
    %v767 = vmax.f32 %v735, 0.0
    %v768 = vmax.f32 %v736, 0.0
    %v769 = vmax.f32 %v737, 0.0
    %v770 = vmax.f32 %v738, 0.0
    %v771 = vmax.f32 %v739, 0.0
    %v772 = vmax.f32 %v740, 0.0
    %v773 = vmax.f32 %v741, 0.0
    %v774 = vmax.f32 %v742, 0.0
    %v775 = vmax.f32 %v743, 0.0
    %v776 = vmax.f32 %v744, 0.0
    %v777 = vmax.f32 %v745, 0.0
    %v778 = vmax.f32 %v746, 0.0
    %v779 = vpack.c.bf16 %v748, %v747
    %v780 = vpack.c.bf16 %v750, %v749
    %v781 = vpack.c.bf16 %v752, %v751
    %v782 = vpack.c.bf16 %v754, %v753
    %v783 = vpack.c.bf16 %v756, %v755
    %v784 = vpack.c.bf16 %v758, %v757
    %v785 = vpack.c.bf16 %v760, %v759
    %v786 = vpack.c.bf16 %v762, %v761
    %v787 = vpack.c.bf16 %v764, %v763
    %v788 = vpack.c.bf16 %v766, %v765
    %v789 = vpack.c.bf16 %v768, %v767
    %v790 = vpack.c.bf16 %v770, %v769
    %v791 = vpack.c.bf16 %v772, %v771
    %v792 = vpack.c.bf16 %v774, %v773
    %v793 = vpack.c.bf16 %v776, %v775
    %v794 = vpack.c.bf16 %v778, %v777
    %v795 = vld [vmem:[#allocation7] sm:$0xf]
    %v796 = vld [vmem:[#allocation7 + $0x4] sm:$0xf]
    %v797 = vld [vmem:[#allocation7 + $0x8] sm:$0xf]
    %v798 = vld [vmem:[#allocation7 + $0xc] sm:$0xf]
    %v799 = vld [vmem:[#allocation7 + $0x10] sm:$0xf]
    %v800 = vld [vmem:[#allocation7 + $0x14] sm:$0xf]
    %v801 = vld [vmem:[#allocation7 + $0x18] sm:$0xf]
    %v802 = vld [vmem:[#allocation7 + $0x1c] sm:$0xf]
    %v803 = vld [vmem:[#allocation7 + $0x20] sm:$0xf]
    %v804 = vld [vmem:[#allocation7 + $0x24] sm:$0xf]
    %v805 = vld [vmem:[#allocation7 + $0x28] sm:$0xf]
    %v806 = vld [vmem:[#allocation7 + $0x2c] sm:$0xf]
    %v807 = vld [vmem:[#allocation7 + $0x30] sm:$0xf]
    %v808 = vld [vmem:[#allocation7 + $0x34] sm:$0xf]
    %v809 = vld [vmem:[#allocation7 + $0x38] sm:$0xf]
    %v810 = vld [vmem:[#allocation7 + $0x3c] sm:$0xf]
    %v827 = vunpack.c.l.b16 %v795
    %v828 = vunpack.c.l.b16 %v796
    %v829 = vunpack.c.l.b16 %v797
    %v830 = vunpack.c.l.b16 %v798
    %v831 = vunpack.c.l.b16 %v799
    %v832 = vunpack.c.l.b16 %v800
    %v833 = vunpack.c.l.b16 %v801
    %v834 = vunpack.c.l.b16 %v802
    %v835 = vunpack.c.l.b16 %v803
    %v836 = vunpack.c.l.b16 %v804
    %v837 = vunpack.c.l.b16 %v805
    %v838 = vunpack.c.l.b16 %v806
    %v839 = vunpack.c.l.b16 %v807
    %v840 = vunpack.c.l.b16 %v808
    %v841 = vunpack.c.l.b16 %v809
    %v842 = vunpack.c.l.b16 %v810
    %v843 = vpack.c.b16 %v828, %v827
    %v844 = vpack.c.b16 %v830, %v829
    %v845 = vpack.c.b16 %v832, %v831
    %v846 = vpack.c.b16 %v834, %v833
    %v847 = vpack.c.b16 %v836, %v835
    %v848 = vpack.c.b16 %v838, %v837
    %v849 = vpack.c.b16 %v840, %v839
    %v850 = vpack.c.b16 %v842, %v841
    %859 = vmatpush.bf16.msra.mxu0 %v850
    %860 = vmatpush.bf16.msra.mxu0 %v849
    %861 = vmatpush.bf16.msra.mxu0 %v848
    %862 = vmatpush.bf16.msra.mxu0 %v847
    %863 = vmatpush.bf16.msra.mxu0 %v846
    %864 = vmatpush.bf16.msra.mxu0 %v845
    %865 = vmatpush.bf16.msra.mxu0 %v844
    %866 = vmatpush.bf16.msra.mxu0 %v843
    %867 = vmatmul.bf16.gmra.mxu0 %v779
    %v868 = vpop.f32.mrf.mxu0
    %v869 = vadd.f32 0.0, %v868
    %v870 = vpop.f32.mrf.mxu0
    %v871 = vadd.f32 0.0, %v870
    %872 = vmatmul.bf16.gmra.mxu0 %v780
    %v873 = vpop.f32.mrf.mxu0
    %v874 = vadd.f32 0.0, %v873
    %v875 = vpop.f32.mrf.mxu0
    %v876 = vadd.f32 0.0, %v875
    %877 = vmatmul.bf16.gmra.mxu0 %v781
    %v878 = vpop.f32.mrf.mxu0
    %v879 = vadd.f32 0.0, %v878
    %v880 = vpop.f32.mrf.mxu0
    %v881 = vadd.f32 0.0, %v880
    %882 = vmatmul.bf16.gmra.mxu0 %v782
    %v883 = vpop.f32.mrf.mxu0
    %v884 = vadd.f32 0.0, %v883
    %v885 = vpop.f32.mrf.mxu0
    %v886 = vadd.f32 0.0, %v885
    %887 = vmatmul.bf16.gmra.mxu0 %v783
    %v888 = vpop.f32.mrf.mxu0
    %v889 = vadd.f32 0.0, %v888
    %v890 = vpop.f32.mrf.mxu0
    %v891 = vadd.f32 0.0, %v890
    %892 = vmatmul.bf16.gmra.mxu0 %v784
    %v893 = vpop.f32.mrf.mxu0
    %v894 = vadd.f32 0.0, %v893
    %v895 = vpop.f32.mrf.mxu0
    %v896 = vadd.f32 0.0, %v895
    %897 = vmatmul.bf16.gmra.mxu0 %v785
    %v898 = vpop.f32.mrf.mxu0
    %v899 = vadd.f32 0.0, %v898
    %v900 = vpop.f32.mrf.mxu0
    %v901 = vadd.f32 0.0, %v900
    %902 = vmatmul.bf16.gmra.mxu0 %v786
    %v903 = vpop.f32.mrf.mxu0
    %v904 = vadd.f32 0.0, %v903
    %v905 = vpop.f32.mrf.mxu0
    %v906 = vadd.f32 0.0, %v905
    %907 = vmatmul.bf16.gmra.mxu0 %v787
    %v908 = vpop.f32.mrf.mxu0
    %v909 = vadd.f32 0.0, %v908
    %v910 = vpop.f32.mrf.mxu0
    %v911 = vadd.f32 0.0, %v910
    %912 = vmatmul.bf16.gmra.mxu0 %v788
    %v913 = vpop.f32.mrf.mxu0
    %v914 = vadd.f32 0.0, %v913
    %v915 = vpop.f32.mrf.mxu0
    %v916 = vadd.f32 0.0, %v915
    %917 = vmatmul.bf16.gmra.mxu0 %v789
    %v918 = vpop.f32.mrf.mxu0
    %v919 = vadd.f32 0.0, %v918
    %v920 = vpop.f32.mrf.mxu0
    %v921 = vadd.f32 0.0, %v920
    %922 = vmatmul.bf16.gmra.mxu0 %v790
    %v923 = vpop.f32.mrf.mxu0
    %v924 = vadd.f32 0.0, %v923
    %v925 = vpop.f32.mrf.mxu0
    %v926 = vadd.f32 0.0, %v925
    %927 = vmatmul.bf16.gmra.mxu0 %v791
    %v928 = vpop.f32.mrf.mxu0
    %v929 = vadd.f32 0.0, %v928
    %v930 = vpop.f32.mrf.mxu0
    %v931 = vadd.f32 0.0, %v930
    %932 = vmatmul.bf16.gmra.mxu0 %v792
    %v933 = vpop.f32.mrf.mxu0
    %v934 = vadd.f32 0.0, %v933
    %v935 = vpop.f32.mrf.mxu0
    %v936 = vadd.f32 0.0, %v935
    %937 = vmatmul.bf16.gmra.mxu0 %v793
    %v938 = vpop.f32.mrf.mxu0
    %v939 = vadd.f32 0.0, %v938
    %v940 = vpop.f32.mrf.mxu0
    %v941 = vadd.f32 0.0, %v940
    %942 = vmatmul.bf16.gmra.mxu0 %v794
    %v943 = vpop.f32.mrf.mxu0
    %v944 = vadd.f32 0.0, %v943
    %v945 = vpop.f32.mrf.mxu0
    %v946 = vadd.f32 0.0, %v945
    %947 = vdwg.mxu0
    %v948 = vld [vmem:[%s4] sm:$0x3]
    %v949 = vadd.f32 %v869, %v871
    %v950 = vadd.f32 %v949, %v874
    %v951 = vadd.f32 %v950, %v876
    %v952 = vadd.f32 %v951, %v879
    %v953 = vadd.f32 %v952, %v881
    %v954 = vadd.f32 %v953, %v884
    %v955 = vadd.f32 %v954, %v886
    %v956 = vadd.f32 %v955, %v889
    %v957 = vadd.f32 %v956, %v891
    %v958 = vadd.f32 %v957, %v894
    %v959 = vadd.f32 %v958, %v896
    %v960 = vadd.f32 %v959, %v899
    %v961 = vadd.f32 %v960, %v901
    %v962 = vadd.f32 %v961, %v904
    %v963 = vadd.f32 %v962, %v906
    %v964 = vadd.f32 %v963, %v909
    %v965 = vadd.f32 %v964, %v911
    %v966 = vadd.f32 %v965, %v914
    %v967 = vadd.f32 %v966, %v916
    %v968 = vadd.f32 %v967, %v919
    %v969 = vadd.f32 %v968, %v921
    %v970 = vadd.f32 %v969, %v924
    %v971 = vadd.f32 %v970, %v926
    %v972 = vadd.f32 %v971, %v929
    %v973 = vadd.f32 %v972, %v931
    %v974 = vadd.f32 %v973, %v934
    %v975 = vadd.f32 %v974, %v936
    %v976 = vadd.f32 %v975, %v939
    %v977 = vadd.f32 %v976, %v941
    %v978 = vadd.f32 %v977, %v944
    %v979 = vadd.f32 %v978, %v946
    %v980 = vrot.slane %v979, 4
    %v981 = vadd.f32 %v979, %v980
    %v982 = vrot.slane %v981, 2
    %v983 = vadd.f32 %v981, %v982
    %v984 = vrot.slane %v983, 1
    %v985 = vadd.f32 %v983, %v984
    %v986 = vmul.f32 %v985, %v562
    %v987 = vmul.f32 %v869, %v869
    %v988 = vmul.f32 %v871, %v871
    %v989 = vmul.f32 %v874, %v874
    %v990 = vmul.f32 %v876, %v876
    %v991 = vmul.f32 %v879, %v879
    %v992 = vmul.f32 %v881, %v881
    %v993 = vmul.f32 %v884, %v884
    %v994 = vmul.f32 %v886, %v886
    %v995 = vmul.f32 %v889, %v889
    %v996 = vmul.f32 %v891, %v891
    %v997 = vmul.f32 %v894, %v894
    %v998 = vmul.f32 %v896, %v896
    %v999 = vmul.f32 %v899, %v899
    %v1000 = vmul.f32 %v901, %v901
    %v1001 = vmul.f32 %v904, %v904
    %v1002 = vmul.f32 %v906, %v906
    %v1003 = vmul.f32 %v909, %v909
    %v1004 = vmul.f32 %v911, %v911
    %v1005 = vmul.f32 %v914, %v914
    %v1006 = vmul.f32 %v916, %v916
    %v1007 = vmul.f32 %v919, %v919
    %v1008 = vmul.f32 %v921, %v921
    %v1009 = vmul.f32 %v924, %v924
    %v1010 = vmul.f32 %v926, %v926
    %v1011 = vmul.f32 %v929, %v929
    %v1012 = vmul.f32 %v931, %v931
    %v1013 = vmul.f32 %v934, %v934
    %v1014 = vmul.f32 %v936, %v936
    %v1015 = vmul.f32 %v939, %v939
    %v1016 = vmul.f32 %v941, %v941
    %v1017 = vmul.f32 %v944, %v944
    %v1018 = vmul.f32 %v946, %v946
    %v1019 = vadd.f32 %v987, %v988
    %v1020 = vadd.f32 %v1019, %v989
    %v1021 = vadd.f32 %v1020, %v990
    %v1022 = vadd.f32 %v1021, %v991
    %v1023 = vadd.f32 %v1022, %v992
    %v1024 = vadd.f32 %v1023, %v993
    %v1025 = vadd.f32 %v1024, %v994
    %v1026 = vadd.f32 %v1025, %v995
    %v1027 = vadd.f32 %v1026, %v996
    %v1028 = vadd.f32 %v1027, %v997
    %v1029 = vadd.f32 %v1028, %v998
    %v1030 = vadd.f32 %v1029, %v999
    %v1031 = vadd.f32 %v1030, %v1000
    %v1032 = vadd.f32 %v1031, %v1001
    %v1033 = vadd.f32 %v1032, %v1002
    %v1034 = vadd.f32 %v1033, %v1003
    %v1035 = vadd.f32 %v1034, %v1004
    %v1036 = vadd.f32 %v1035, %v1005
    %v1037 = vadd.f32 %v1036, %v1006
    %v1038 = vadd.f32 %v1037, %v1007
    %v1039 = vadd.f32 %v1038, %v1008
    %v1040 = vadd.f32 %v1039, %v1009
    %v1041 = vadd.f32 %v1040, %v1010
    %v1042 = vadd.f32 %v1041, %v1011
    %v1043 = vadd.f32 %v1042, %v1012
    %v1044 = vadd.f32 %v1043, %v1013
    %v1045 = vadd.f32 %v1044, %v1014
    %v1046 = vadd.f32 %v1045, %v1015
    %v1047 = vadd.f32 %v1046, %v1016
    %v1048 = vadd.f32 %v1047, %v1017
    %v1049 = vadd.f32 %v1048, %v1018
    %v1050 = vrot.slane %v1049, 4
    %v1051 = vadd.f32 %v1049, %v1050
    %v1052 = vrot.slane %v1051, 2
    %v1053 = vadd.f32 %v1051, %v1052
    %v1054 = vrot.slane %v1053, 1
    %v1055 = vadd.f32 %v1053, %v1054
    %v1056 = vmul.f32 %v1055, %v562
    %v1057 = vmul.f32 %v986, %v986
    %v1058 = vsub.f32 %v1056, %v1057
    %v1059 = vmax.f32 %v1058, 0.0
    %v1060 = vadd.f32 %v1059, 1e-05
    %v1061 = vrsqrt.pop %v1060
    %v1062 = vmul.f32 %v1061, %v1060
    %v1063 = vmul.f32 %v1062, %v1061
    %v1064 = vmul.f32 0.5, %v1063
    %v1065 = vsub.f32 1.5, %v1064
    %v1066 = vmul.f32 %v1061, %v1065
    %vm1067 = vweird.f32 %v1060
    %vm1068 = vweird.f32 %v1061
    %vm1069 = vmor %vm1067, %vm1068
    %v1070 = vsel %vm1069, %v1061, %v1066
    %v1071 = vmul.f32 %v1070, %v948
    %v1072 = vsub.f32 %v869, %v986
    %v1073 = vsub.f32 %v871, %v986
    %v1074 = vsub.f32 %v874, %v986
    %v1075 = vsub.f32 %v876, %v986
    %v1076 = vsub.f32 %v879, %v986
    %v1077 = vsub.f32 %v881, %v986
    %v1078 = vsub.f32 %v884, %v986
    %v1079 = vsub.f32 %v886, %v986
    %v1080 = vsub.f32 %v889, %v986
    %v1081 = vsub.f32 %v891, %v986
    %v1082 = vsub.f32 %v894, %v986
    %v1083 = vsub.f32 %v896, %v986
    %v1084 = vsub.f32 %v899, %v986
    %v1085 = vsub.f32 %v901, %v986
    %v1086 = vsub.f32 %v904, %v986
    %v1087 = vsub.f32 %v906, %v986
    %v1088 = vsub.f32 %v909, %v986
    %v1089 = vsub.f32 %v911, %v986
    %v1090 = vsub.f32 %v914, %v986
    %v1091 = vsub.f32 %v916, %v986
    %v1092 = vsub.f32 %v919, %v986
    %v1093 = vsub.f32 %v921, %v986
    %v1094 = vsub.f32 %v924, %v986
    %v1095 = vsub.f32 %v926, %v986
    %v1096 = vsub.f32 %v929, %v986
    %v1097 = vsub.f32 %v931, %v986
    %v1098 = vsub.f32 %v934, %v986
    %v1099 = vsub.f32 %v936, %v986
    %v1100 = vsub.f32 %v939, %v986
    %v1101 = vsub.f32 %v941, %v986
    %v1102 = vsub.f32 %v944, %v986
    %v1103 = vsub.f32 %v946, %v986
    %v1104 = vperm.slane %v1071, 0
    %v1105 = vmul.f32 %v1072, %v1104
    %v1106 = vmul.f32 %v1073, %v1104
    %v1107 = vmul.f32 %v1074, %v1104
    %v1108 = vmul.f32 %v1075, %v1104
    %v1109 = vmul.f32 %v1076, %v1104
    %v1110 = vmul.f32 %v1077, %v1104
    %v1111 = vmul.f32 %v1078, %v1104
    %v1112 = vmul.f32 %v1079, %v1104
    %v1113 = vmul.f32 %v1080, %v1104
    %v1114 = vmul.f32 %v1081, %v1104
    %v1115 = vmul.f32 %v1082, %v1104
    %v1116 = vmul.f32 %v1083, %v1104
    %v1117 = vmul.f32 %v1084, %v1104
    %v1118 = vmul.f32 %v1085, %v1104
    %v1119 = vmul.f32 %v1086, %v1104
    %v1120 = vmul.f32 %v1087, %v1104
    %v1121 = vmul.f32 %v1088, %v1104
    %v1122 = vmul.f32 %v1089, %v1104
    %v1123 = vmul.f32 %v1090, %v1104
    %v1124 = vmul.f32 %v1091, %v1104
    %v1125 = vmul.f32 %v1092, %v1104
    %v1126 = vmul.f32 %v1093, %v1104
    %v1127 = vmul.f32 %v1094, %v1104
    %v1128 = vmul.f32 %v1095, %v1104
    %v1129 = vmul.f32 %v1096, %v1104
    %v1130 = vmul.f32 %v1097, %v1104
    %v1131 = vmul.f32 %v1098, %v1104
    %v1132 = vmul.f32 %v1099, %v1104
    %v1133 = vmul.f32 %v1100, %v1104
    %v1134 = vmul.f32 %v1101, %v1104
    %v1135 = vmul.f32 %v1102, %v1104
    %v1136 = vmul.f32 %v1103, %v1104
    %v1137 = vperm.slane %v948, 1
    %v1138 = vadd.f32 %v1105, %v1137
    %v1139 = vadd.f32 %v1106, %v1137
    %v1140 = vadd.f32 %v1107, %v1137
    %v1141 = vadd.f32 %v1108, %v1137
    %v1142 = vadd.f32 %v1109, %v1137
    %v1143 = vadd.f32 %v1110, %v1137
    %v1144 = vadd.f32 %v1111, %v1137
    %v1145 = vadd.f32 %v1112, %v1137
    %v1146 = vadd.f32 %v1113, %v1137
    %v1147 = vadd.f32 %v1114, %v1137
    %v1148 = vadd.f32 %v1115, %v1137
    %v1149 = vadd.f32 %v1116, %v1137
    %v1150 = vadd.f32 %v1117, %v1137
    %v1151 = vadd.f32 %v1118, %v1137
    %v1152 = vadd.f32 %v1119, %v1137
    %v1153 = vadd.f32 %v1120, %v1137
    %v1154 = vadd.f32 %v1121, %v1137
    %v1155 = vadd.f32 %v1122, %v1137
    %v1156 = vadd.f32 %v1123, %v1137
    %v1157 = vadd.f32 %v1124, %v1137
    %v1158 = vadd.f32 %v1125, %v1137
    %v1159 = vadd.f32 %v1126, %v1137
    %v1160 = vadd.f32 %v1127, %v1137
    %v1161 = vadd.f32 %v1128, %v1137
    %v1162 = vadd.f32 %v1129, %v1137
    %v1163 = vadd.f32 %v1130, %v1137
    %v1164 = vadd.f32 %v1131, %v1137
    %v1165 = vadd.f32 %v1132, %v1137
    %v1166 = vadd.f32 %v1133, %v1137
    %v1167 = vadd.f32 %v1134, %v1137
    %v1168 = vadd.f32 %v1135, %v1137
    %v1169 = vadd.f32 %v1136, %v1137
    %v1170 = vmax.f32 %v1138, 0.0
    %v1171 = vmax.f32 %v1139, 0.0
    %v1172 = vmax.f32 %v1140, 0.0
    %v1173 = vmax.f32 %v1141, 0.0
    %v1174 = vmax.f32 %v1142, 0.0
    %v1175 = vmax.f32 %v1143, 0.0
    %v1176 = vmax.f32 %v1144, 0.0
    %v1177 = vmax.f32 %v1145, 0.0
    %v1178 = vmax.f32 %v1146, 0.0
    %v1179 = vmax.f32 %v1147, 0.0
    %v1180 = vmax.f32 %v1148, 0.0
    %v1181 = vmax.f32 %v1149, 0.0
    %v1182 = vmax.f32 %v1150, 0.0
    %v1183 = vmax.f32 %v1151, 0.0
    %v1184 = vmax.f32 %v1152, 0.0
    %v1185 = vmax.f32 %v1153, 0.0
    %v1186 = vmax.f32 %v1154, 0.0
    %v1187 = vmax.f32 %v1155, 0.0
    %v1188 = vmax.f32 %v1156, 0.0
    %v1189 = vmax.f32 %v1157, 0.0
    %v1190 = vmax.f32 %v1158, 0.0
    %v1191 = vmax.f32 %v1159, 0.0
    %v1192 = vmax.f32 %v1160, 0.0
    %v1193 = vmax.f32 %v1161, 0.0
    %v1194 = vmax.f32 %v1162, 0.0
    %v1195 = vmax.f32 %v1163, 0.0
    %v1196 = vmax.f32 %v1164, 0.0
    %v1197 = vmax.f32 %v1165, 0.0
    %v1198 = vmax.f32 %v1166, 0.0
    %v1199 = vmax.f32 %v1167, 0.0
    %v1200 = vmax.f32 %v1168, 0.0
    %v1201 = vmax.f32 %v1169, 0.0
    %v1202 = vpack.c.bf16 %v1171, %v1170
    %v1203 = vpack.c.bf16 %v1173, %v1172
    %v1204 = vpack.c.bf16 %v1175, %v1174
    %v1205 = vpack.c.bf16 %v1177, %v1176
    %v1206 = vpack.c.bf16 %v1179, %v1178
    %v1207 = vpack.c.bf16 %v1181, %v1180
    %v1208 = vpack.c.bf16 %v1183, %v1182
    %v1209 = vpack.c.bf16 %v1185, %v1184
    %v1210 = vpack.c.bf16 %v1187, %v1186
    %v1211 = vpack.c.bf16 %v1189, %v1188
    %v1212 = vpack.c.bf16 %v1191, %v1190
    %v1213 = vpack.c.bf16 %v1193, %v1192
    %v1214 = vpack.c.bf16 %v1195, %v1194
    %v1215 = vpack.c.bf16 %v1197, %v1196
    %v1216 = vpack.c.bf16 %v1199, %v1198
    %v1217 = vpack.c.bf16 %v1201, %v1200
    %v1218 = vld [vmem:[#allocation9] sm:$0xf]
    %v1219 = vld [vmem:[#allocation9 + $0x4] sm:$0xf]
    %v1220 = vld [vmem:[#allocation9 + $0x8] sm:$0xf]
    %v1221 = vld [vmem:[#allocation9 + $0xc] sm:$0xf]
    %v1222 = vld [vmem:[#allocation9 + $0x10] sm:$0xf]
    %v1223 = vld [vmem:[#allocation9 + $0x14] sm:$0xf]
    %v1224 = vld [vmem:[#allocation9 + $0x18] sm:$0xf]
    %v1225 = vld [vmem:[#allocation9 + $0x1c] sm:$0xf]
    %v1226 = vld [vmem:[#allocation9 + $0x20] sm:$0xf]
    %v1227 = vld [vmem:[#allocation9 + $0x24] sm:$0xf]
    %v1228 = vld [vmem:[#allocation9 + $0x28] sm:$0xf]
    %v1229 = vld [vmem:[#allocation9 + $0x2c] sm:$0xf]
    %v1230 = vld [vmem:[#allocation9 + $0x30] sm:$0xf]
    %v1231 = vld [vmem:[#allocation9 + $0x34] sm:$0xf]
    %v1232 = vld [vmem:[#allocation9 + $0x38] sm:$0xf]
    %v1233 = vld [vmem:[#allocation9 + $0x3c] sm:$0xf]
    %v1234 = vld [vmem:[#allocation10] sm:$0x1]
    %v1236 = vperm.slane %v1234, 0
    %v1254 = vunpack.c.l.b16 %v1218
    %v1255 = vunpack.c.l.b16 %v1219
    %v1256 = vunpack.c.l.b16 %v1220
    %v1257 = vunpack.c.l.b16 %v1221
    %v1258 = vunpack.c.l.b16 %v1222
    %v1259 = vunpack.c.l.b16 %v1223
    %v1260 = vunpack.c.l.b16 %v1224
    %v1261 = vunpack.c.l.b16 %v1225
    %v1262 = vunpack.c.l.b16 %v1226
    %v1263 = vunpack.c.l.b16 %v1227
    %v1264 = vunpack.c.l.b16 %v1228
    %v1265 = vunpack.c.l.b16 %v1229
    %v1266 = vunpack.c.l.b16 %v1230
    %v1267 = vunpack.c.l.b16 %v1231
    %v1268 = vunpack.c.l.b16 %v1232
    %v1269 = vunpack.c.l.b16 %v1233
    %v1270 = vpack.c.b16 %v1255, %v1254
    %v1271 = vpack.c.b16 %v1257, %v1256
    %v1272 = vpack.c.b16 %v1259, %v1258
    %v1273 = vpack.c.b16 %v1261, %v1260
    %v1274 = vpack.c.b16 %v1263, %v1262
    %v1275 = vpack.c.b16 %v1265, %v1264
    %v1276 = vpack.c.b16 %v1267, %v1266
    %v1277 = vpack.c.b16 %v1269, %v1268
    %1286 = vmatpush.bf16.msra.mxu0 %v1277
    %1287 = vmatpush.bf16.msra.mxu0 %v1276
    %1288 = vmatpush.bf16.msra.mxu0 %v1275
    %1289 = vmatpush.bf16.msra.mxu0 %v1274
    %1290 = vmatpush.bf16.msra.mxu0 %v1273
    %1291 = vmatpush.bf16.msra.mxu0 %v1272
    %1292 = vmatpush.bf16.msra.mxu0 %v1271
    %1293 = vmatpush.bf16.msra.mxu0 %v1270
    %1294 = vmatmul.bf16.gmra.mxu0 %v1202
    %v1295 = vpop.f32.mrf.mxu0
    %v1296 = vadd.f32 %v1236, %v1295
    %v1297 = vpop.f32.mrf.mxu0
    %v1298 = vadd.f32 %v1236, %v1297
    %1299 = vmatmul.bf16.gmra.mxu0 %v1203
    %v1300 = vpop.f32.mrf.mxu0
    %v1301 = vadd.f32 %v1236, %v1300
    %v1302 = vpop.f32.mrf.mxu0
    %v1303 = vadd.f32 %v1236, %v1302
    %1304 = vmatmul.bf16.gmra.mxu0 %v1204
    %v1305 = vpop.f32.mrf.mxu0
    %v1306 = vadd.f32 %v1236, %v1305
    %v1307 = vpop.f32.mrf.mxu0
    %v1308 = vadd.f32 %v1236, %v1307
    %1309 = vmatmul.bf16.gmra.mxu0 %v1205
    %v1310 = vpop.f32.mrf.mxu0
    %v1311 = vadd.f32 %v1236, %v1310
    %v1312 = vpop.f32.mrf.mxu0
    %v1313 = vadd.f32 %v1236, %v1312
    %1314 = vmatmul.bf16.gmra.mxu0 %v1206
    %v1315 = vpop.f32.mrf.mxu0
    %v1316 = vadd.f32 %v1236, %v1315
    %v1317 = vpop.f32.mrf.mxu0
    %v1318 = vadd.f32 %v1236, %v1317
    %1319 = vmatmul.bf16.gmra.mxu0 %v1207
    %v1320 = vpop.f32.mrf.mxu0
    %v1321 = vadd.f32 %v1236, %v1320
    %v1322 = vpop.f32.mrf.mxu0
    %v1323 = vadd.f32 %v1236, %v1322
    %1324 = vmatmul.bf16.gmra.mxu0 %v1208
    %v1325 = vpop.f32.mrf.mxu0
    %v1326 = vadd.f32 %v1236, %v1325
    %v1327 = vpop.f32.mrf.mxu0
    %v1328 = vadd.f32 %v1236, %v1327
    %1329 = vmatmul.bf16.gmra.mxu0 %v1209
    %v1330 = vpop.f32.mrf.mxu0
    %v1331 = vadd.f32 %v1236, %v1330
    %v1332 = vpop.f32.mrf.mxu0
    %v1333 = vadd.f32 %v1236, %v1332
    %1334 = vmatmul.bf16.gmra.mxu0 %v1210
    %v1335 = vpop.f32.mrf.mxu0
    %v1336 = vadd.f32 %v1236, %v1335
    %v1337 = vpop.f32.mrf.mxu0
    %v1338 = vadd.f32 %v1236, %v1337
    %1339 = vmatmul.bf16.gmra.mxu0 %v1211
    %v1340 = vpop.f32.mrf.mxu0
    %v1341 = vadd.f32 %v1236, %v1340
    %v1342 = vpop.f32.mrf.mxu0
    %v1343 = vadd.f32 %v1236, %v1342
    %1344 = vmatmul.bf16.gmra.mxu0 %v1212
    %v1345 = vpop.f32.mrf.mxu0
    %v1346 = vadd.f32 %v1236, %v1345
    %v1347 = vpop.f32.mrf.mxu0
    %v1348 = vadd.f32 %v1236, %v1347
    %1349 = vmatmul.bf16.gmra.mxu0 %v1213
    %v1350 = vpop.f32.mrf.mxu0
    %v1351 = vadd.f32 %v1236, %v1350
    %v1352 = vpop.f32.mrf.mxu0
    %v1353 = vadd.f32 %v1236, %v1352
    %1354 = vmatmul.bf16.gmra.mxu0 %v1214
    %v1355 = vpop.f32.mrf.mxu0
    %v1356 = vadd.f32 %v1236, %v1355
    %v1357 = vpop.f32.mrf.mxu0
    %v1358 = vadd.f32 %v1236, %v1357
    %1359 = vmatmul.bf16.gmra.mxu0 %v1215
    %v1360 = vpop.f32.mrf.mxu0
    %v1361 = vadd.f32 %v1236, %v1360
    %v1362 = vpop.f32.mrf.mxu0
    %v1363 = vadd.f32 %v1236, %v1362
    %1364 = vmatmul.bf16.gmra.mxu0 %v1216
    %v1365 = vpop.f32.mrf.mxu0
    %v1366 = vadd.f32 %v1236, %v1365
    %v1367 = vpop.f32.mrf.mxu0
    %v1368 = vadd.f32 %v1236, %v1367
    %1369 = vmatmul.bf16.gmra.mxu0 %v1217
    %v1370 = vpop.f32.mrf.mxu0
    %v1371 = vadd.f32 %v1236, %v1370
    %v1372 = vpop.f32.mrf.mxu0
    %v1373 = vadd.f32 %v1236, %v1372
    %1374 = vdwg.mxu0
    %v1375 = vxor.u32 %v1296, 2147483648
    %v1376 = vxor.u32 %v1298, 2147483648
    %v1377 = vxor.u32 %v1301, 2147483648
    %v1378 = vxor.u32 %v1303, 2147483648
    %v1379 = vxor.u32 %v1306, 2147483648
    %v1380 = vxor.u32 %v1308, 2147483648
    %v1381 = vxor.u32 %v1311, 2147483648
    %v1382 = vxor.u32 %v1313, 2147483648
    %v1383 = vxor.u32 %v1316, 2147483648
    %v1384 = vxor.u32 %v1318, 2147483648
    %v1385 = vxor.u32 %v1321, 2147483648
    %v1386 = vxor.u32 %v1323, 2147483648
    %v1387 = vxor.u32 %v1326, 2147483648
    %v1388 = vxor.u32 %v1328, 2147483648
    %v1389 = vxor.u32 %v1331, 2147483648
    %v1390 = vxor.u32 %v1333, 2147483648
    %v1391 = vxor.u32 %v1336, 2147483648
    %v1392 = vxor.u32 %v1338, 2147483648
    %v1393 = vxor.u32 %v1341, 2147483648
    %v1394 = vxor.u32 %v1343, 2147483648
    %v1395 = vxor.u32 %v1346, 2147483648
    %v1396 = vxor.u32 %v1348, 2147483648
    %v1397 = vxor.u32 %v1351, 2147483648
    %v1398 = vxor.u32 %v1353, 2147483648
    %v1399 = vxor.u32 %v1356, 2147483648
    %v1400 = vxor.u32 %v1358, 2147483648
    %v1401 = vxor.u32 %v1361, 2147483648
    %v1402 = vxor.u32 %v1363, 2147483648
    %v1403 = vxor.u32 %v1366, 2147483648
    %v1404 = vxor.u32 %v1368, 2147483648
    %v1405 = vxor.u32 %v1371, 2147483648
    %v1406 = vxor.u32 %v1373, 2147483648
    %v1407 = vmul.f32 %v1375, 1.442695
    %v1408 = vpow.pop %v1407
    %v1409 = vmul.f32 %v1376, 1.442695
    %v1410 = vpow.pop %v1409
    %v1411 = vmul.f32 %v1377, 1.442695
    %v1412 = vpow.pop %v1411
    %v1413 = vmul.f32 %v1378, 1.442695
    %v1414 = vpow.pop %v1413
    %v1415 = vmul.f32 %v1379, 1.442695
    %v1416 = vpow.pop %v1415
    %v1417 = vmul.f32 %v1380, 1.442695
    %v1418 = vpow.pop %v1417
    %v1419 = vmul.f32 %v1381, 1.442695
    %v1420 = vpow.pop %v1419
    %v1421 = vmul.f32 %v1382, 1.442695
    %v1422 = vpow.pop %v1421
    %v1423 = vmul.f32 %v1383, 1.442695
    %v1424 = vpow.pop %v1423
    %v1425 = vmul.f32 %v1384, 1.442695
    %v1426 = vpow.pop %v1425
    %v1427 = vmul.f32 %v1385, 1.442695
    %v1428 = vpow.pop %v1427
    %v1429 = vmul.f32 %v1386, 1.442695
    %v1430 = vpow.pop %v1429
    %v1431 = vmul.f32 %v1387, 1.442695
    %v1432 = vpow.pop %v1431
    %v1433 = vmul.f32 %v1388, 1.442695
    %v1434 = vpow.pop %v1433
    %v1435 = vmul.f32 %v1389, 1.442695
    %v1436 = vpow.pop %v1435
    %v1437 = vmul.f32 %v1390, 1.442695
    %v1438 = vpow.pop %v1437
    %v1439 = vmul.f32 %v1391, 1.442695
    %v1440 = vpow.pop %v1439
    %v1441 = vmul.f32 %v1392, 1.442695
    %v1442 = vpow.pop %v1441
    %v1443 = vmul.f32 %v1393, 1.442695
    %v1444 = vpow.pop %v1443
    %v1445 = vmul.f32 %v1394, 1.442695
    %v1446 = vpow.pop %v1445
    %v1447 = vmul.f32 %v1395, 1.442695
    %v1448 = vpow.pop %v1447
    %v1449 = vmul.f32 %v1396, 1.442695
    %v1450 = vpow.pop %v1449
    %v1451 = vmul.f32 %v1397, 1.442695
    %v1452 = vpow.pop %v1451
    %v1453 = vmul.f32 %v1398, 1.442695
    %v1454 = vpow.pop %v1453
    %v1455 = vmul.f32 %v1399, 1.442695
    %v1456 = vpow.pop %v1455
    %v1457 = vmul.f32 %v1400, 1.442695
    %v1458 = vpow.pop %v1457
    %v1459 = vmul.f32 %v1401, 1.442695
    %v1460 = vpow.pop %v1459
    %v1461 = vmul.f32 %v1402, 1.442695
    %v1462 = vpow.pop %v1461
    %v1463 = vmul.f32 %v1403, 1.442695
    %v1464 = vpow.pop %v1463
    %v1465 = vmul.f32 %v1404, 1.442695
    %v1466 = vpow.pop %v1465
    %v1467 = vmul.f32 %v1405, 1.442695
    %v1468 = vpow.pop %v1467
    %v1469 = vmul.f32 %v1406, 1.442695
    %v1470 = vpow.pop %v1469
    %v1471 = vadd.f32 %v1408, 1.0
    %v1472 = vadd.f32 %v1410, 1.0
    %v1473 = vadd.f32 %v1412, 1.0
    %v1474 = vadd.f32 %v1414, 1.0
    %v1475 = vadd.f32 %v1416, 1.0
    %v1476 = vadd.f32 %v1418, 1.0
    %v1477 = vadd.f32 %v1420, 1.0
    %v1478 = vadd.f32 %v1422, 1.0
    %v1479 = vadd.f32 %v1424, 1.0
    %v1480 = vadd.f32 %v1426, 1.0
    %v1481 = vadd.f32 %v1428, 1.0
    %v1482 = vadd.f32 %v1430, 1.0
    %v1483 = vadd.f32 %v1432, 1.0
    %v1484 = vadd.f32 %v1434, 1.0
    %v1485 = vadd.f32 %v1436, 1.0
    %v1486 = vadd.f32 %v1438, 1.0
    %v1487 = vadd.f32 %v1440, 1.0
    %v1488 = vadd.f32 %v1442, 1.0
    %v1489 = vadd.f32 %v1444, 1.0
    %v1490 = vadd.f32 %v1446, 1.0
    %v1491 = vadd.f32 %v1448, 1.0
    %v1492 = vadd.f32 %v1450, 1.0
    %v1493 = vadd.f32 %v1452, 1.0
    %v1494 = vadd.f32 %v1454, 1.0
    %v1495 = vadd.f32 %v1456, 1.0
    %v1496 = vadd.f32 %v1458, 1.0
    %v1497 = vadd.f32 %v1460, 1.0
    %v1498 = vadd.f32 %v1462, 1.0
    %v1499 = vadd.f32 %v1464, 1.0
    %v1500 = vadd.f32 %v1466, 1.0
    %v1501 = vadd.f32 %v1468, 1.0
    %v1502 = vadd.f32 %v1470, 1.0
    %v1503 = vrcp.pop %v1471
    %v1504 = vmul.f32 %v1471, %v1503
    %v1505 = vsub.f32 1.0, %v1504
    %v1506 = vmul.f32 %v1503, %v1505
    %v1507 = vadd.f32 %v1503, %v1506
    %vm1508 = vweird.f32 %v1471
    %vm1509 = vweird.f32 %v1503
    %vm1510 = vmor %vm1508, %vm1509
    %v1511 = vsel %vm1510, %v1503, %v1507
    %v1512 = vand.u32 2147483647, %v1471
    %vm1513 = vcmp.eq.f32.partialorder %v1512, 8.507059e+37
    %v1514 = vand.u32 %v1471, 2147483648
    %v1515 = vor.u32 1.1754944e-38, %v1514
    %v1516 = vsel %vm1513, %v1515, %v1511
    %v1517 = vmul.f32 1.0, %v1516
    %v1518 = vrcp.pop %v1472
    %v1519 = vmul.f32 %v1472, %v1518
    %v1520 = vsub.f32 1.0, %v1519
    %v1521 = vmul.f32 %v1518, %v1520
    %v1522 = vadd.f32 %v1518, %v1521
    %vm1523 = vweird.f32 %v1472
    %vm1524 = vweird.f32 %v1518
    %vm1525 = vmor %vm1523, %vm1524
    %v1526 = vsel %vm1525, %v1518, %v1522
    %v1527 = vand.u32 2147483647, %v1472
    %vm1528 = vcmp.eq.f32.partialorder %v1527, 8.507059e+37
    %v1529 = vand.u32 %v1472, 2147483648
    %v1530 = vor.u32 1.1754944e-38, %v1529
    %v1531 = vsel %vm1528, %v1530, %v1526
    %v1532 = vmul.f32 1.0, %v1531
    %v1533 = vrcp.pop %v1473
    %v1534 = vmul.f32 %v1473, %v1533
    %v1535 = vsub.f32 1.0, %v1534
    %v1536 = vmul.f32 %v1533, %v1535
    %v1537 = vadd.f32 %v1533, %v1536
    %vm1538 = vweird.f32 %v1473
    %vm1539 = vweird.f32 %v1533
    %vm1540 = vmor %vm1538, %vm1539
    %v1541 = vsel %vm1540, %v1533, %v1537
    %v1542 = vand.u32 2147483647, %v1473
    %vm1543 = vcmp.eq.f32.partialorder %v1542, 8.507059e+37
    %v1544 = vand.u32 %v1473, 2147483648
    %v1545 = vor.u32 1.1754944e-38, %v1544
    %v1546 = vsel %vm1543, %v1545, %v1541
    %v1547 = vmul.f32 1.0, %v1546
    %v1548 = vrcp.pop %v1474
    %v1549 = vmul.f32 %v1474, %v1548
    %v1550 = vsub.f32 1.0, %v1549
    %v1551 = vmul.f32 %v1548, %v1550
    %v1552 = vadd.f32 %v1548, %v1551
    %vm1553 = vweird.f32 %v1474
    %vm1554 = vweird.f32 %v1548
    %vm1555 = vmor %vm1553, %vm1554
    %v1556 = vsel %vm1555, %v1548, %v1552
    %v1557 = vand.u32 2147483647, %v1474
    %vm1558 = vcmp.eq.f32.partialorder %v1557, 8.507059e+37
    %v1559 = vand.u32 %v1474, 2147483648
    %v1560 = vor.u32 1.1754944e-38, %v1559
    %v1561 = vsel %vm1558, %v1560, %v1556
    %v1562 = vmul.f32 1.0, %v1561
    %v1563 = vrcp.pop %v1475
    %v1564 = vmul.f32 %v1475, %v1563
    %v1565 = vsub.f32 1.0, %v1564
    %v1566 = vmul.f32 %v1563, %v1565
    %v1567 = vadd.f32 %v1563, %v1566
    %vm1568 = vweird.f32 %v1475
    %vm1569 = vweird.f32 %v1563
    %vm1570 = vmor %vm1568, %vm1569
    %v1571 = vsel %vm1570, %v1563, %v1567
    %v1572 = vand.u32 2147483647, %v1475
    %vm1573 = vcmp.eq.f32.partialorder %v1572, 8.507059e+37
    %v1574 = vand.u32 %v1475, 2147483648
    %v1575 = vor.u32 1.1754944e-38, %v1574
    %v1576 = vsel %vm1573, %v1575, %v1571
    %v1577 = vmul.f32 1.0, %v1576
    %v1578 = vrcp.pop %v1476
    %v1579 = vmul.f32 %v1476, %v1578
    %v1580 = vsub.f32 1.0, %v1579
    %v1581 = vmul.f32 %v1578, %v1580
    %v1582 = vadd.f32 %v1578, %v1581
    %vm1583 = vweird.f32 %v1476
    %vm1584 = vweird.f32 %v1578
    %vm1585 = vmor %vm1583, %vm1584
    %v1586 = vsel %vm1585, %v1578, %v1582
    %v1587 = vand.u32 2147483647, %v1476
    %vm1588 = vcmp.eq.f32.partialorder %v1587, 8.507059e+37
    %v1589 = vand.u32 %v1476, 2147483648
    %v1590 = vor.u32 1.1754944e-38, %v1589
    %v1591 = vsel %vm1588, %v1590, %v1586
    %v1592 = vmul.f32 1.0, %v1591
    %v1593 = vrcp.pop %v1477
    %v1594 = vmul.f32 %v1477, %v1593
    %v1595 = vsub.f32 1.0, %v1594
    %v1596 = vmul.f32 %v1593, %v1595
    %v1597 = vadd.f32 %v1593, %v1596
    %vm1598 = vweird.f32 %v1477
    %vm1599 = vweird.f32 %v1593
    %vm1600 = vmor %vm1598, %vm1599
    %v1601 = vsel %vm1600, %v1593, %v1597
    %v1602 = vand.u32 2147483647, %v1477
    %vm1603 = vcmp.eq.f32.partialorder %v1602, 8.507059e+37
    %v1604 = vand.u32 %v1477, 2147483648
    %v1605 = vor.u32 1.1754944e-38, %v1604
    %v1606 = vsel %vm1603, %v1605, %v1601
    %v1607 = vmul.f32 1.0, %v1606
    %v1608 = vrcp.pop %v1478
    %v1609 = vmul.f32 %v1478, %v1608
    %v1610 = vsub.f32 1.0, %v1609
    %v1611 = vmul.f32 %v1608, %v1610
    %v1612 = vadd.f32 %v1608, %v1611
    %vm1613 = vweird.f32 %v1478
    %vm1614 = vweird.f32 %v1608
    %vm1615 = vmor %vm1613, %vm1614
    %v1616 = vsel %vm1615, %v1608, %v1612
    %v1617 = vand.u32 2147483647, %v1478
    %vm1618 = vcmp.eq.f32.partialorder %v1617, 8.507059e+37
    %v1619 = vand.u32 %v1478, 2147483648
    %v1620 = vor.u32 1.1754944e-38, %v1619
    %v1621 = vsel %vm1618, %v1620, %v1616
    %v1622 = vmul.f32 1.0, %v1621
    %v1623 = vrcp.pop %v1479
    %v1624 = vmul.f32 %v1479, %v1623
    %v1625 = vsub.f32 1.0, %v1624
    %v1626 = vmul.f32 %v1623, %v1625
    %v1627 = vadd.f32 %v1623, %v1626
    %vm1628 = vweird.f32 %v1479
    %vm1629 = vweird.f32 %v1623
    %vm1630 = vmor %vm1628, %vm1629
    %v1631 = vsel %vm1630, %v1623, %v1627
    %v1632 = vand.u32 2147483647, %v1479
    %vm1633 = vcmp.eq.f32.partialorder %v1632, 8.507059e+37
    %v1634 = vand.u32 %v1479, 2147483648
    %v1635 = vor.u32 1.1754944e-38, %v1634
    %v1636 = vsel %vm1633, %v1635, %v1631
    %v1637 = vmul.f32 1.0, %v1636
    %v1638 = vrcp.pop %v1480
    %v1639 = vmul.f32 %v1480, %v1638
    %v1640 = vsub.f32 1.0, %v1639
    %v1641 = vmul.f32 %v1638, %v1640
    %v1642 = vadd.f32 %v1638, %v1641
    %vm1643 = vweird.f32 %v1480
    %vm1644 = vweird.f32 %v1638
    %vm1645 = vmor %vm1643, %vm1644
    %v1646 = vsel %vm1645, %v1638, %v1642
    %v1647 = vand.u32 2147483647, %v1480
    %vm1648 = vcmp.eq.f32.partialorder %v1647, 8.507059e+37
    %v1649 = vand.u32 %v1480, 2147483648
    %v1650 = vor.u32 1.1754944e-38, %v1649
    %v1651 = vsel %vm1648, %v1650, %v1646
    %v1652 = vmul.f32 1.0, %v1651
    %v1653 = vrcp.pop %v1481
    %v1654 = vmul.f32 %v1481, %v1653
    %v1655 = vsub.f32 1.0, %v1654
    %v1656 = vmul.f32 %v1653, %v1655
    %v1657 = vadd.f32 %v1653, %v1656
    %vm1658 = vweird.f32 %v1481
    %vm1659 = vweird.f32 %v1653
    %vm1660 = vmor %vm1658, %vm1659
    %v1661 = vsel %vm1660, %v1653, %v1657
    %v1662 = vand.u32 2147483647, %v1481
    %vm1663 = vcmp.eq.f32.partialorder %v1662, 8.507059e+37
    %v1664 = vand.u32 %v1481, 2147483648
    %v1665 = vor.u32 1.1754944e-38, %v1664
    %v1666 = vsel %vm1663, %v1665, %v1661
    %v1667 = vmul.f32 1.0, %v1666
    %v1668 = vrcp.pop %v1482
    %v1669 = vmul.f32 %v1482, %v1668
    %v1670 = vsub.f32 1.0, %v1669
    %v1671 = vmul.f32 %v1668, %v1670
    %v1672 = vadd.f32 %v1668, %v1671
    %vm1673 = vweird.f32 %v1482
    %vm1674 = vweird.f32 %v1668
    %vm1675 = vmor %vm1673, %vm1674
    %v1676 = vsel %vm1675, %v1668, %v1672
    %v1677 = vand.u32 2147483647, %v1482
    %vm1678 = vcmp.eq.f32.partialorder %v1677, 8.507059e+37
    %v1679 = vand.u32 %v1482, 2147483648
    %v1680 = vor.u32 1.1754944e-38, %v1679
    %v1681 = vsel %vm1678, %v1680, %v1676
    %v1682 = vmul.f32 1.0, %v1681
    %v1683 = vrcp.pop %v1483
    %v1684 = vmul.f32 %v1483, %v1683
    %v1685 = vsub.f32 1.0, %v1684
    %v1686 = vmul.f32 %v1683, %v1685
    %v1687 = vadd.f32 %v1683, %v1686
    %vm1688 = vweird.f32 %v1483
    %vm1689 = vweird.f32 %v1683
    %vm1690 = vmor %vm1688, %vm1689
    %v1691 = vsel %vm1690, %v1683, %v1687
    %v1692 = vand.u32 2147483647, %v1483
    %vm1693 = vcmp.eq.f32.partialorder %v1692, 8.507059e+37
    %v1694 = vand.u32 %v1483, 2147483648
    %v1695 = vor.u32 1.1754944e-38, %v1694
    %v1696 = vsel %vm1693, %v1695, %v1691
    %v1697 = vmul.f32 1.0, %v1696
    %v1698 = vrcp.pop %v1484
    %v1699 = vmul.f32 %v1484, %v1698
    %v1700 = vsub.f32 1.0, %v1699
    %v1701 = vmul.f32 %v1698, %v1700
    %v1702 = vadd.f32 %v1698, %v1701
    %vm1703 = vweird.f32 %v1484
    %vm1704 = vweird.f32 %v1698
    %vm1705 = vmor %vm1703, %vm1704
    %v1706 = vsel %vm1705, %v1698, %v1702
    %v1707 = vand.u32 2147483647, %v1484
    %vm1708 = vcmp.eq.f32.partialorder %v1707, 8.507059e+37
    %v1709 = vand.u32 %v1484, 2147483648
    %v1710 = vor.u32 1.1754944e-38, %v1709
    %v1711 = vsel %vm1708, %v1710, %v1706
    %v1712 = vmul.f32 1.0, %v1711
    %v1713 = vrcp.pop %v1485
    %v1714 = vmul.f32 %v1485, %v1713
    %v1715 = vsub.f32 1.0, %v1714
    %v1716 = vmul.f32 %v1713, %v1715
    %v1717 = vadd.f32 %v1713, %v1716
    %vm1718 = vweird.f32 %v1485
    %vm1719 = vweird.f32 %v1713
    %vm1720 = vmor %vm1718, %vm1719
    %v1721 = vsel %vm1720, %v1713, %v1717
    %v1722 = vand.u32 2147483647, %v1485
    %vm1723 = vcmp.eq.f32.partialorder %v1722, 8.507059e+37
    %v1724 = vand.u32 %v1485, 2147483648
    %v1725 = vor.u32 1.1754944e-38, %v1724
    %v1726 = vsel %vm1723, %v1725, %v1721
    %v1727 = vmul.f32 1.0, %v1726
    %v1728 = vrcp.pop %v1486
    %v1729 = vmul.f32 %v1486, %v1728
    %v1730 = vsub.f32 1.0, %v1729
    %v1731 = vmul.f32 %v1728, %v1730
    %v1732 = vadd.f32 %v1728, %v1731
    %vm1733 = vweird.f32 %v1486
    %vm1734 = vweird.f32 %v1728
    %vm1735 = vmor %vm1733, %vm1734
    %v1736 = vsel %vm1735, %v1728, %v1732
    %v1737 = vand.u32 2147483647, %v1486
    %vm1738 = vcmp.eq.f32.partialorder %v1737, 8.507059e+37
    %v1739 = vand.u32 %v1486, 2147483648
    %v1740 = vor.u32 1.1754944e-38, %v1739
    %v1741 = vsel %vm1738, %v1740, %v1736
    %v1742 = vmul.f32 1.0, %v1741
    %v1743 = vrcp.pop %v1487
    %v1744 = vmul.f32 %v1487, %v1743
    %v1745 = vsub.f32 1.0, %v1744
    %v1746 = vmul.f32 %v1743, %v1745
    %v1747 = vadd.f32 %v1743, %v1746
    %vm1748 = vweird.f32 %v1487
    %vm1749 = vweird.f32 %v1743
    %vm1750 = vmor %vm1748, %vm1749
    %v1751 = vsel %vm1750, %v1743, %v1747
    %v1752 = vand.u32 2147483647, %v1487
    %vm1753 = vcmp.eq.f32.partialorder %v1752, 8.507059e+37
    %v1754 = vand.u32 %v1487, 2147483648
    %v1755 = vor.u32 1.1754944e-38, %v1754
    %v1756 = vsel %vm1753, %v1755, %v1751
    %v1757 = vmul.f32 1.0, %v1756
    %v1758 = vrcp.pop %v1488
    %v1759 = vmul.f32 %v1488, %v1758
    %v1760 = vsub.f32 1.0, %v1759
    %v1761 = vmul.f32 %v1758, %v1760
    %v1762 = vadd.f32 %v1758, %v1761
    %vm1763 = vweird.f32 %v1488
    %vm1764 = vweird.f32 %v1758
    %vm1765 = vmor %vm1763, %vm1764
    %v1766 = vsel %vm1765, %v1758, %v1762
    %v1767 = vand.u32 2147483647, %v1488
    %vm1768 = vcmp.eq.f32.partialorder %v1767, 8.507059e+37
    %v1769 = vand.u32 %v1488, 2147483648
    %v1770 = vor.u32 1.1754944e-38, %v1769
    %v1771 = vsel %vm1768, %v1770, %v1766
    %v1772 = vmul.f32 1.0, %v1771
    %v1773 = vrcp.pop %v1489
    %v1774 = vmul.f32 %v1489, %v1773
    %v1775 = vsub.f32 1.0, %v1774
    %v1776 = vmul.f32 %v1773, %v1775
    %v1777 = vadd.f32 %v1773, %v1776
    %vm1778 = vweird.f32 %v1489
    %vm1779 = vweird.f32 %v1773
    %vm1780 = vmor %vm1778, %vm1779
    %v1781 = vsel %vm1780, %v1773, %v1777
    %v1782 = vand.u32 2147483647, %v1489
    %vm1783 = vcmp.eq.f32.partialorder %v1782, 8.507059e+37
    %v1784 = vand.u32 %v1489, 2147483648
    %v1785 = vor.u32 1.1754944e-38, %v1784
    %v1786 = vsel %vm1783, %v1785, %v1781
    %v1787 = vmul.f32 1.0, %v1786
    %v1788 = vrcp.pop %v1490
    %v1789 = vmul.f32 %v1490, %v1788
    %v1790 = vsub.f32 1.0, %v1789
    %v1791 = vmul.f32 %v1788, %v1790
    %v1792 = vadd.f32 %v1788, %v1791
    %vm1793 = vweird.f32 %v1490
    %vm1794 = vweird.f32 %v1788
    %vm1795 = vmor %vm1793, %vm1794
    %v1796 = vsel %vm1795, %v1788, %v1792
    %v1797 = vand.u32 2147483647, %v1490
    %vm1798 = vcmp.eq.f32.partialorder %v1797, 8.507059e+37
    %v1799 = vand.u32 %v1490, 2147483648
    %v1800 = vor.u32 1.1754944e-38, %v1799
    %v1801 = vsel %vm1798, %v1800, %v1796
    %v1802 = vmul.f32 1.0, %v1801
    %v1803 = vrcp.pop %v1491
    %v1804 = vmul.f32 %v1491, %v1803
    %v1805 = vsub.f32 1.0, %v1804
    %v1806 = vmul.f32 %v1803, %v1805
    %v1807 = vadd.f32 %v1803, %v1806
    %vm1808 = vweird.f32 %v1491
    %vm1809 = vweird.f32 %v1803
    %vm1810 = vmor %vm1808, %vm1809
    %v1811 = vsel %vm1810, %v1803, %v1807
    %v1812 = vand.u32 2147483647, %v1491
    %vm1813 = vcmp.eq.f32.partialorder %v1812, 8.507059e+37
    %v1814 = vand.u32 %v1491, 2147483648
    %v1815 = vor.u32 1.1754944e-38, %v1814
    %v1816 = vsel %vm1813, %v1815, %v1811
    %v1817 = vmul.f32 1.0, %v1816
    %v1818 = vrcp.pop %v1492
    %v1819 = vmul.f32 %v1492, %v1818
    %v1820 = vsub.f32 1.0, %v1819
    %v1821 = vmul.f32 %v1818, %v1820
    %v1822 = vadd.f32 %v1818, %v1821
    %vm1823 = vweird.f32 %v1492
    %vm1824 = vweird.f32 %v1818
    %vm1825 = vmor %vm1823, %vm1824
    %v1826 = vsel %vm1825, %v1818, %v1822
    %v1827 = vand.u32 2147483647, %v1492
    %vm1828 = vcmp.eq.f32.partialorder %v1827, 8.507059e+37
    %v1829 = vand.u32 %v1492, 2147483648
    %v1830 = vor.u32 1.1754944e-38, %v1829
    %v1831 = vsel %vm1828, %v1830, %v1826
    %v1832 = vmul.f32 1.0, %v1831
    %v1833 = vrcp.pop %v1493
    %v1834 = vmul.f32 %v1493, %v1833
    %v1835 = vsub.f32 1.0, %v1834
    %v1836 = vmul.f32 %v1833, %v1835
    %v1837 = vadd.f32 %v1833, %v1836
    %vm1838 = vweird.f32 %v1493
    %vm1839 = vweird.f32 %v1833
    %vm1840 = vmor %vm1838, %vm1839
    %v1841 = vsel %vm1840, %v1833, %v1837
    %v1842 = vand.u32 2147483647, %v1493
    %vm1843 = vcmp.eq.f32.partialorder %v1842, 8.507059e+37
    %v1844 = vand.u32 %v1493, 2147483648
    %v1845 = vor.u32 1.1754944e-38, %v1844
    %v1846 = vsel %vm1843, %v1845, %v1841
    %v1847 = vmul.f32 1.0, %v1846
    %v1848 = vrcp.pop %v1494
    %v1849 = vmul.f32 %v1494, %v1848
    %v1850 = vsub.f32 1.0, %v1849
    %v1851 = vmul.f32 %v1848, %v1850
    %v1852 = vadd.f32 %v1848, %v1851
    %vm1853 = vweird.f32 %v1494
    %vm1854 = vweird.f32 %v1848
    %vm1855 = vmor %vm1853, %vm1854
    %v1856 = vsel %vm1855, %v1848, %v1852
    %v1857 = vand.u32 2147483647, %v1494
    %vm1858 = vcmp.eq.f32.partialorder %v1857, 8.507059e+37
    %v1859 = vand.u32 %v1494, 2147483648
    %v1860 = vor.u32 1.1754944e-38, %v1859
    %v1861 = vsel %vm1858, %v1860, %v1856
    %v1862 = vmul.f32 1.0, %v1861
    %v1863 = vrcp.pop %v1495
    %v1864 = vmul.f32 %v1495, %v1863
    %v1865 = vsub.f32 1.0, %v1864
    %v1866 = vmul.f32 %v1863, %v1865
    %v1867 = vadd.f32 %v1863, %v1866
    %vm1868 = vweird.f32 %v1495
    %vm1869 = vweird.f32 %v1863
    %vm1870 = vmor %vm1868, %vm1869
    %v1871 = vsel %vm1870, %v1863, %v1867
    %v1872 = vand.u32 2147483647, %v1495
    %vm1873 = vcmp.eq.f32.partialorder %v1872, 8.507059e+37
    %v1874 = vand.u32 %v1495, 2147483648
    %v1875 = vor.u32 1.1754944e-38, %v1874
    %v1876 = vsel %vm1873, %v1875, %v1871
    %v1877 = vmul.f32 1.0, %v1876
    %v1878 = vrcp.pop %v1496
    %v1879 = vmul.f32 %v1496, %v1878
    %v1880 = vsub.f32 1.0, %v1879
    %v1881 = vmul.f32 %v1878, %v1880
    %v1882 = vadd.f32 %v1878, %v1881
    %vm1883 = vweird.f32 %v1496
    %vm1884 = vweird.f32 %v1878
    %vm1885 = vmor %vm1883, %vm1884
    %v1886 = vsel %vm1885, %v1878, %v1882
    %v1887 = vand.u32 2147483647, %v1496
    %vm1888 = vcmp.eq.f32.partialorder %v1887, 8.507059e+37
    %v1889 = vand.u32 %v1496, 2147483648
    %v1890 = vor.u32 1.1754944e-38, %v1889
    %v1891 = vsel %vm1888, %v1890, %v1886
    %v1892 = vmul.f32 1.0, %v1891
    %v1893 = vrcp.pop %v1497
    %v1894 = vmul.f32 %v1497, %v1893
    %v1895 = vsub.f32 1.0, %v1894
    %v1896 = vmul.f32 %v1893, %v1895
    %v1897 = vadd.f32 %v1893, %v1896
    %vm1898 = vweird.f32 %v1497
    %vm1899 = vweird.f32 %v1893
    %vm1900 = vmor %vm1898, %vm1899
    %v1901 = vsel %vm1900, %v1893, %v1897
    %v1902 = vand.u32 2147483647, %v1497
    %vm1903 = vcmp.eq.f32.partialorder %v1902, 8.507059e+37
    %v1904 = vand.u32 %v1497, 2147483648
    %v1905 = vor.u32 1.1754944e-38, %v1904
    %v1906 = vsel %vm1903, %v1905, %v1901
    %v1907 = vmul.f32 1.0, %v1906
    %v1908 = vrcp.pop %v1498
    %v1909 = vmul.f32 %v1498, %v1908
    %v1910 = vsub.f32 1.0, %v1909
    %v1911 = vmul.f32 %v1908, %v1910
    %v1912 = vadd.f32 %v1908, %v1911
    %vm1913 = vweird.f32 %v1498
    %vm1914 = vweird.f32 %v1908
    %vm1915 = vmor %vm1913, %vm1914
    %v1916 = vsel %vm1915, %v1908, %v1912
    %v1917 = vand.u32 2147483647, %v1498
    %vm1918 = vcmp.eq.f32.partialorder %v1917, 8.507059e+37
    %v1919 = vand.u32 %v1498, 2147483648
    %v1920 = vor.u32 1.1754944e-38, %v1919
    %v1921 = vsel %vm1918, %v1920, %v1916
    %v1922 = vmul.f32 1.0, %v1921
    %v1923 = vrcp.pop %v1499
    %v1924 = vmul.f32 %v1499, %v1923
    %v1925 = vsub.f32 1.0, %v1924
    %v1926 = vmul.f32 %v1923, %v1925
    %v1927 = vadd.f32 %v1923, %v1926
    %vm1928 = vweird.f32 %v1499
    %vm1929 = vweird.f32 %v1923
    %vm1930 = vmor %vm1928, %vm1929
    %v1931 = vsel %vm1930, %v1923, %v1927
    %v1932 = vand.u32 2147483647, %v1499
    %vm1933 = vcmp.eq.f32.partialorder %v1932, 8.507059e+37
    %v1934 = vand.u32 %v1499, 2147483648
    %v1935 = vor.u32 1.1754944e-38, %v1934
    %v1936 = vsel %vm1933, %v1935, %v1931
    %v1937 = vmul.f32 1.0, %v1936
    %v1938 = vrcp.pop %v1500
    %v1939 = vmul.f32 %v1500, %v1938
    %v1940 = vsub.f32 1.0, %v1939
    %v1941 = vmul.f32 %v1938, %v1940
    %v1942 = vadd.f32 %v1938, %v1941
    %vm1943 = vweird.f32 %v1500
    %vm1944 = vweird.f32 %v1938
    %vm1945 = vmor %vm1943, %vm1944
    %v1946 = vsel %vm1945, %v1938, %v1942
    %v1947 = vand.u32 2147483647, %v1500
    %vm1948 = vcmp.eq.f32.partialorder %v1947, 8.507059e+37
    %v1949 = vand.u32 %v1500, 2147483648
    %v1950 = vor.u32 1.1754944e-38, %v1949
    %v1951 = vsel %vm1948, %v1950, %v1946
    %v1952 = vmul.f32 1.0, %v1951
    %v1953 = vrcp.pop %v1501
    %v1954 = vmul.f32 %v1501, %v1953
    %v1955 = vsub.f32 1.0, %v1954
    %v1956 = vmul.f32 %v1953, %v1955
    %v1957 = vadd.f32 %v1953, %v1956
    %vm1958 = vweird.f32 %v1501
    %vm1959 = vweird.f32 %v1953
    %vm1960 = vmor %vm1958, %vm1959
    %v1961 = vsel %vm1960, %v1953, %v1957
    %v1962 = vand.u32 2147483647, %v1501
    %vm1963 = vcmp.eq.f32.partialorder %v1962, 8.507059e+37
    %v1964 = vand.u32 %v1501, 2147483648
    %v1965 = vor.u32 1.1754944e-38, %v1964
    %v1966 = vsel %vm1963, %v1965, %v1961
    %v1967 = vmul.f32 1.0, %v1966
    %v1968 = vrcp.pop %v1502
    %v1969 = vmul.f32 %v1502, %v1968
    %v1970 = vsub.f32 1.0, %v1969
    %v1971 = vmul.f32 %v1968, %v1970
    %v1972 = vadd.f32 %v1968, %v1971
    %vm1973 = vweird.f32 %v1502
    %vm1974 = vweird.f32 %v1968
    %vm1975 = vmor %vm1973, %vm1974
    %v1976 = vsel %vm1975, %v1968, %v1972
    %v1977 = vand.u32 2147483647, %v1502
    %vm1978 = vcmp.eq.f32.partialorder %v1977, 8.507059e+37
    %v1979 = vand.u32 %v1502, 2147483648
    %v1980 = vor.u32 1.1754944e-38, %v1979
    %v1981 = vsel %vm1978, %v1980, %v1976
    %v1982 = vmul.f32 1.0, %v1981
    %1983 = vst [vmem:[%s7] sm:$0xff] %v1517
    %1984 = vst [vmem:[%s7 + $0x8] sm:$0xff] %v1532
    %1985 = vst [vmem:[%s7 + $0x10] sm:$0xff] %v1547
    %1986 = vst [vmem:[%s7 + $0x18] sm:$0xff] %v1562
    %1987 = vst [vmem:[%s7 + $0x20] sm:$0xff] %v1577
    %1988 = vst [vmem:[%s7 + $0x28] sm:$0xff] %v1592
    %1989 = vst [vmem:[%s7 + $0x30] sm:$0xff] %v1607
    %1990 = vst [vmem:[%s7 + $0x38] sm:$0xff] %v1622
    %1991 = vst [vmem:[%s7 + $0x40] sm:$0xff] %v1637
    %1992 = vst [vmem:[%s7 + $0x48] sm:$0xff] %v1652
    %1993 = vst [vmem:[%s7 + $0x50] sm:$0xff] %v1667
    %1994 = vst [vmem:[%s7 + $0x58] sm:$0xff] %v1682
    %1995 = vst [vmem:[%s7 + $0x60] sm:$0xff] %v1697
    %1996 = vst [vmem:[%s7 + $0x68] sm:$0xff] %v1712
    %1997 = vst [vmem:[%s7 + $0x70] sm:$0xff] %v1727
    %1998 = vst [vmem:[%s7 + $0x78] sm:$0xff] %v1742
    %1999 = vst [vmem:[%s7 + $0x80] sm:$0xff] %v1757
    %2000 = vst [vmem:[%s7 + $0x88] sm:$0xff] %v1772
    %2001 = vst [vmem:[%s7 + $0x90] sm:$0xff] %v1787
    %2002 = vst [vmem:[%s7 + $0x98] sm:$0xff] %v1802
    %2003 = vst [vmem:[%s7 + $0xa0] sm:$0xff] %v1817
    %2004 = vst [vmem:[%s7 + $0xa8] sm:$0xff] %v1832
    %2005 = vst [vmem:[%s7 + $0xb0] sm:$0xff] %v1847
    %2006 = vst [vmem:[%s7 + $0xb8] sm:$0xff] %v1862
    %2007 = vst [vmem:[%s7 + $0xc0] sm:$0xff] %v1877
    %2008 = vst [vmem:[%s7 + $0xc8] sm:$0xff] %v1892
    %2009 = vst [vmem:[%s7 + $0xd0] sm:$0xff] %v1907
    %2010 = vst [vmem:[%s7 + $0xd8] sm:$0xff] %v1922
    %2011 = vst [vmem:[%s7 + $0xe0] sm:$0xff] %v1937
    %2012 = vst [vmem:[%s7 + $0xe8] sm:$0xff] %v1952
    %2013 = vst [vmem:[%s7 + $0xf0] sm:$0xff] %v1967
    %2014 = vst [vmem:[%s7 + $0xf8] sm:$0xff] %v1982
    // Predicated region
    $region54: #{_lambda_.1} parent=1 // pred_check
      _
    $region55: #{_lambda_.1} parent=1 // pred_check_branch
      %2016 = sbr.rel (0) target = $region57
    $region56: #{_lambda_.1} parent=1 // pred_region
      _
    $region57: #{_lambda_.1} parent=1 // pred_fallthru
      _
    // Predicated region
    $region58: #{_lambda_.1} parent=1 // pred_check
      _
    $region59: #{_lambda_.1} parent=1 // pred_check_branch
      %2018 = sbr.rel (0) target = $region61
    $region60: #{_lambda_.1} parent=1 // pred_region
      _
    $region61: #{_lambda_.1} parent=1 // pred_fallthru
      _
    %2019 = vsyncpa [#allocation3], 1
    %2020 = vsyncpa [#allocation5], 1
    %2021 = vsyncpa [#allocation8], 1
    %2022 = vsyncpa [#allocation11], 1

</llo_original>
